<compile_context>
chip_gen: v7x
topology: tpu7x:2x2x1
jax: 0.10.0
libtpu: 0.0.40
codegen_flags: <defaults>
</compile_context>

<pallas_src>
import functools

import jax
import jax.numpy as jnp
from jax import lax
from jax.experimental import pallas as pl
from jax.experimental.pallas import tpu as pltpu


def _round_up(x: int, m: int) -> int:
    return (x + m - 1) // m * m


def _epilogue(emb, max_norm, only_positive):
    """Optional torch-style max_norm renorm (+ abs), computed in f32."""
    if max_norm is not None:
        x = emb.astype(jnp.float32)
        sq = jnp.sum(x * x, axis=-1, keepdims=True)
        # torch: scale = max_norm / (norm + 1e-7) iff norm > max_norm.
        # Compare squared norms; one exact rsqrt (single EUP op).
        scale = jnp.where(sq > jnp.float32(max_norm) * jnp.float32(max_norm),
                          jnp.float32(max_norm) * lax.rsqrt(sq),
                          jnp.float32(1.0))
        emb = (x * scale).astype(emb.dtype)
    if only_positive:
        emb = jnp.abs(emb)
    return emb


# ----------------------------------------------------------------------------
# Kernel 1: VMEM-resident table, one output row per logical index.
# ----------------------------------------------------------------------------
def _gather_vmem_kernel(idx_ref, table_ref, out_ref, *, tile_n, max_norm,
                        only_positive):
    """idx_ref: (n_pad,) i32 SMEM | table_ref: (v_pad, d_pad) VMEM |
       out_ref: (tile_n, d_pad)."""
    base = pl.program_id(0) * tile_n

    def gather_row(r, carry):
        out_ref[r, :] = table_ref[idx_ref[base + r], :]
        return carry

    # Unrolled: rows are independent -> co-issue loads/stores across iterations.
    lax.fori_loop(0, tile_n, gather_row, 0, unroll=8)

    if (max_norm is not None) or only_positive:
        out_ref[...] = _epilogue(out_ref[...], max_norm, only_positive)


# ----------------------------------------------------------------------------
# Kernel 2: VMEM-resident table, lane-packed output for small dims (d | 128).
# `group` logical rows share one 128-lane physical output row, so the block
# writeback stays lane-dense while output HBM bytes shrink by `group`x.
# ----------------------------------------------------------------------------
def _gather_vmem_packed_kernel(idx_ref, table_ref, out_ref, *, tile_p, group,
                               d, only_positive):
    """out_ref: (tile_p, 128); logical row p*group + j lives at lanes
       [j*d, (j+1)*d) of physical row p."""
    base = pl.program_id(0) * (tile_p * group)

    def gather_group(p, carry):
        b = base + p * group
        for j in range(group):                      # static inner unroll
            row = table_ref[pl.ds(idx_ref[b + j], 1), pl.ds(0, d)]
            out_ref[pl.ds(p, 1), pl.ds(j * d, d)] = row
        return carry

    lax.fori_loop(0, tile_p, gather_group, 0, unroll=8)

    if only_positive:
        out_ref[...] = jnp.abs(out_ref[...])


# ----------------------------------------------------------------------------
# Kernel 3: HBM-resident table (too large for VMEM), per-row DMA gather with a
# 4-deep in-flight pipeline into a VMEM scratch, then one lane-dense store.
# ----------------------------------------------------------------------------
def _gather_hbm_kernel(idx_ref, table_hbm, out_ref, gbuf, sems, *, tile_n,
                       n_buf, max_norm, only_positive):
    base = pl.program_id(0) * tile_n

    def start_row(r, slot):
        pltpu.make_async_copy(table_hbm.at[pl.ds(idx_ref[base + r], 1)],
                              gbuf.at[pl.ds(r, 1)],
                              sems.at[slot]).start()

    # Prime the DMA pipeline.
    for s in range(min(n_buf, tile_n)):
        start_row(s, s)

    def wait_and_refill(r, carry):
        slot = r % n_buf
        pltpu.make_async_copy(table_hbm.at[pl.ds(0, 1)],
                              gbuf.at[pl.ds(r, 1)],
                              sems.at[slot]).wait()

        @pl.when(r + n_buf < tile_n)
        def _():
            start_row(r + n_buf, slot)

        return carry

    lax.fori_loop(0, tile_n, wait_and_refill, 0)

    out_ref[...] = _epilogue(gbuf[...], max_norm, only_positive)


# ----------------------------------------------------------------------------
# Host-side wrappers
# ----------------------------------------------------------------------------
def prepare_table(table):
    """Pad the embedding table once (hoist this out of the per-step call).

    Pads the embedding dim to a multiple of 128 lanes and the vocab to the
    sublane granularity of the dtype.  Returns (padded_table, n_objects, dim).
    """
    n_objects, d = table.shape
    itemsize = table.dtype.itemsize
    sub = {4: 8, 2: 16, 1: 32}.get(itemsize, 8)
    d_pad = _round_up(d, 128)
    v_pad = _round_up(n_objects, sub)
    padded = table
    if d_pad != d or v_pad != n_objects:
        padded = jnp.pad(table, ((0, v_pad - n_objects), (0, d_pad - d)))
    return padded, n_objects, d


def embedding_forward(o_idxs, table=None, *, max_norm=None, only_positive=False,
                      prepared=None, tile_rows=None, table_in_hbm=None):
    """Pallas equivalent of Embedding.forward.

    o_idxs   : integer array, arbitrary leading shape.
    table    : (n_objects, D) embedding weights (any float dtype).
    prepared : optional result of prepare_table(table) to skip per-call padding.
    returns  : o_idxs.shape + (D,) embeddings in the table dtype.
    """
    if prepared is None:
        prepared = prepare_table(table)
    table_pad, n_objects, d = prepared
    v_pad, d_pad = table_pad.shape
    dtype = table_pad.dtype
    itemsize = dtype.itemsize

    lead_shape = o_idxs.shape
    idx = o_idxs.reshape(-1).astype(jnp.int32)
    n = int(idx.shape[0])
    if n == 0:
        return jnp.zeros(lead_shape + (d,), dtype)
    idx = jnp.clip(idx, 0, n_objects - 1)       # jnp.take semantics (torch raises)

    # ---- capacity-aware VMEM budgeting / path selection ---------------------
    try:
        vmem_cap = int(pltpu.get_tpu_info().vmem_capacity_bytes)
    except Exception:
        vmem_cap = 64 * 1024 * 1024              # v7x per-TC floor
    usable = int(0.80 * vmem_cap)
    table_bytes = v_pad * d_pad * itemsize

    use_hbm = table_in_hbm
    if use_hbm is None:
        # Conservative: assume the pipeline may hold two copies of the table
        # block if the single-buffered spec is unavailable.
        use_hbm = (2 * table_bytes + (6 << 20)) > usable

    # ---- lane packing for small dims (only on the VMEM path, no max_norm) ---
    group = 1
    if (not use_hbm) and max_norm is None and d < 128 and 128 % d == 0:
        g = 128 // d
        if g <= 8:
            group = g
    out_width = 128 if group > 1 else d_pad

    # ---- tile sizing ---------------------------------------------------------
    gran = 8 * group                              # physical out rows stay %8
    row_out_bytes = (out_width // group) * itemsize
    if tile_rows is None:
        if use_hbm:
            tile_rows = 512
        else:
            # ~0.5 MiB of output per grid step amortizes per-step overhead.
            tile_rows = max(256, min(2048, (512 * 1024) // max(1, row_out_bytes)))
    # Ensure >=2 grid steps when there is enough work (v7x megacore).
    half = -(-n // 2)
    tile_n = max(gran, min(_round_up(tile_rows, gran), _round_up(half, gran)))

    n_pad = _round_up(n, tile_n)
    idx_padded = jnp.pad(idx, (0, n_pad - n))
    grid = (n_pad // tile_n,)

    tile_out_rows = tile_n // group
    out_rows = n_pad // group
    out_tile_bytes = tile_out_rows * out_width * itemsize
    out_shape = jax.ShapeDtypeStruct((out_rows, out_width), dtype)
    out_spec = pl.BlockSpec((tile_out_rows, out_width), lambda i, idx_ref: (i, 0))

    if use_hbm:
        n_buf = 4
        gbuf_bytes = tile_n * d_pad * itemsize
        vmem_limit = int(min(usable,
                             max(32 << 20,
                                 2 * out_tile_bytes + gbuf_bytes + (8 << 20))))
        kernel = functools.partial(_gather_hbm_kernel, tile_n=tile_n,
                                   n_buf=n_buf, max_norm=max_norm,
                                   only_positive=only_positive)
        out = pl.pallas_call(
            kernel,
            out_shape=out_shape,
            grid_spec=pltpu.PrefetchScalarGridSpec(
                num_scalar_prefetch=1,                    # indices -> SMEM
                grid=grid,
                in_specs=[pl.BlockSpec(memory_space=pl.ANY)],   # table in HBM
                out_specs=out_spec,
                scratch_shapes=[pltpu.VMEM((tile_n, d_pad), dtype),
                                pltpu.SemaphoreType.DMA((n_buf,))]),
            compiler_params=pltpu.CompilerParams(
                dimension_semantics=("parallel",),
                vmem_limit_bytes=vmem_limit),
        )(idx_padded, table_pad)
    else:
        vmem_limit = int(min(usable,
                             max(32 << 20,
                                 2 * table_bytes + 2 * out_tile_bytes + (8 << 20))))
        if group > 1:
            kernel = functools.partial(_gather_vmem_packed_kernel,
                                       tile_p=tile_out_rows, group=group, d=d,
                                       only_positive=only_positive)
        else:
            kernel = functools.partial(_gather_vmem_kernel, tile_n=tile_n,
                                       max_norm=max_norm,
                                       only_positive=only_positive)

        def build(table_spec):
            return pl.pallas_call(
                kernel,
                out_shape=out_shape,
                grid_spec=pltpu.PrefetchScalarGridSpec(
                    num_scalar_prefetch=1,                # indices -> SMEM
                    grid=grid,
                    in_specs=[table_spec],
                    out_specs=out_spec),
                compiler_params=pltpu.CompilerParams(
                    dimension_semantics=("parallel",),
                    vmem_limit_bytes=vmem_limit),
            )

        try:
            # Whole-array VMEM residency: a single copy of the table in VMEM,
            # no per-step re-DMA and no double-buffering of a constant block.
            out = build(pl.BlockSpec(memory_space=pltpu.MemorySpace.VMEM))(
                idx_padded, table_pad)
        except Exception:
            # Fallback for JAX versions without memory-space-only input specs:
            # blocked table with a constant index map.  The pipeline may hold
            # two copies; vmem_limit and the HBM-path threshold above already
            # budget 2x the table, so this cannot blow past capacity.
            out = build(pl.BlockSpec((v_pad, d_pad),
                                     lambda i, idx_ref: (0, 0)))(
                idx_padded, table_pad)

    if group > 1:
        out = out.reshape(n_pad, d)      # (n_pad//g, g*d) -> (n_pad, d), no copy
    else:
        out = out[:, :d]
    return out[:n].reshape(lead_shape + (d,))


if __name__ == "__main__":
    # Deterministic synthetic parameters / inputs (small, module-consistent).
    n_objects = 64
    embedding_dim = 32
    batch, seq = 2, 8

    key = jax.random.PRNGKey(0)
    k_w, k_i = jax.random.split(key)

    # nn.Embedding default init: N(0, 1) over (n_objects, embedding_dim).
    table = jax.random.normal(k_w, (n_objects, embedding_dim), jnp.float32)
    o_idxs = jax.random.randint(k_i, (batch, seq), 0, n_objects, jnp.int32)

    prepared = prepare_table(table)            # hoisted table prep (one-time)
    ref = jnp.take(table, o_idxs, axis=0)

    # 1) plain lookup -> lane-packed VMEM-resident path (d=32 packs 4 rows/128).
    emb = jax.block_until_ready(embedding_forward(o_idxs, table,
                                                  prepared=prepared))
    assert emb.shape == (batch, seq, embedding_dim)
    assert emb.dtype == table.dtype
    assert jnp.allclose(emb, ref, atol=1e-6, rtol=1e-6)

    # 2) max_norm + only_positive -> unpacked VMEM path with fused epilogue.
    max_norm = 1.0
    emb2 = jax.block_until_ready(
        embedding_forward(o_idxs, table, max_norm=max_norm, only_positive=True,
                          prepared=prepared))
    norm = jnp.linalg.norm(ref, axis=-1, keepdims=True)
    ref2 = jnp.abs(ref * jnp.where(norm > max_norm, max_norm / (norm + 1e-7), 1.0))
    assert jnp.allclose(emb2, ref2, atol=1e-4, rtol=1e-4)

    # 3) HBM-resident table path (forced here; auto-selected for large tables).
    emb3 = jax.block_until_ready(
        embedding_forward(o_idxs, table, prepared=prepared, table_in_hbm=True))
    assert jnp.allclose(emb3, ref, atol=1e-6, rtol=1e-6)

    print("KERNEL_OK")
</pallas_src>

<mosaic_0001>
module attributes {stable_mosaic.version = 11 : i64} {
  func.func @_gather_vmem_packed_kernel(%arg0: i32, %arg1: memref<32xi32, #tpu.memory_space<smem>>, %arg2: memref<64x128xf32, #tpu.memory_space<vmem>>, %arg3: memref<8x128xf32, #tpu.memory_space<vmem>>) attributes {dimension_semantics = [#tpu.dimension_semantics<parallel>], iteration_bounds = array<i64: 1>, scalar_prefetch = 1 : i64, scratch_operands = 0 : i64, tpu.core_type = #tpu.core_type<tc>, window_params = [{pipeline_mode = #tpu.pipeline_mode<synchronous>, transform_indices = @transform_0, window_bounds = array<i64: 64, 128>}, {transform_indices = @transform_1, window_bounds = array<i64: 8, 128>}]} {
    %c32_i32 = arith.constant 32 : i32
    %0 = arith.muli %arg0, %c32_i32 : i32
    %c0_i32 = arith.constant 0 : i32
    %c4_i32 = arith.constant 4 : i32
    %1 = arith.muli %c0_i32, %c4_i32 : i32
    %2 = arith.addi %0, %1 : i32
    %c0_i32_0 = arith.constant 0 : i32
    %3 = arith.addi %2, %c0_i32_0 : i32
    %4 = arith.index_cast %3 : i32 to index
    %5 = memref.load %arg1[%4] : memref<32xi32, #tpu.memory_space<smem>>
    %6 = arith.index_cast %5 : i32 to index
    %c0 = arith.constant 0 : index
    %7 = vector.load %arg2[%6, %c0] : memref<64x128xf32, #tpu.memory_space<vmem>>, vector<1x32xf32>
    %8 = arith.index_cast %c0_i32 : i32 to index
    %c0_1 = arith.constant 0 : index
    %9 = vector.load %arg3[%8, %c0_1] : memref<8x128xf32, #tpu.memory_space<vmem>>, vector<1x32xf32>
    tpu.vector_store %arg3[%8, %c0_1], %7 {strides = array<i32>} : memref<8x128xf32, #tpu.memory_space<vmem>>, vector<1x32xf32>,
    %c1_i32 = arith.constant 1 : i32
    %10 = arith.addi %2, %c1_i32 : i32
    %11 = arith.index_cast %10 : i32 to index
    %12 = memref.load %arg1[%11] : memref<32xi32, #tpu.memory_space<smem>>
    %13 = arith.index_cast %12 : i32 to index
    %c0_2 = arith.constant 0 : index
    %14 = vector.load %arg2[%13, %c0_2] : memref<64x128xf32, #tpu.memory_space<vmem>>, vector<1x32xf32>
    %15 = arith.index_cast %c0_i32 : i32 to index
    %c32 = arith.constant 32 : index
    %16 = vector.load %arg3[%15, %c32] : memref<8x128xf32, #tpu.memory_space<vmem>>, vector<1x32xf32>
    tpu.vector_store %arg3[%15, %c32], %14 {strides = array<i32>} : memref<8x128xf32, #tpu.memory_space<vmem>>, vector<1x32xf32>,
    %c2_i32 = arith.constant 2 : i32
    %17 = arith.addi %2, %c2_i32 : i32
    %18 = arith.index_cast %17 : i32 to index
    %19 = memref.load %arg1[%18] : memref<32xi32, #tpu.memory_space<smem>>
    %20 = arith.index_cast %19 : i32 to index
    %c0_3 = arith.constant 0 : index
    %21 = vector.load %arg2[%20, %c0_3] : memref<64x128xf32, #tpu.memory_space<vmem>>, vector<1x32xf32>
    %22 = arith.index_cast %c0_i32 : i32 to index
    %c64 = arith.constant 64 : index
    %23 = vector.load %arg3[%22, %c64] : memref<8x128xf32, #tpu.memory_space<vmem>>, vector<1x32xf32>
    tpu.vector_store %arg3[%22, %c64], %21 {strides = array<i32>} : memref<8x128xf32, #tpu.memory_space<vmem>>, vector<1x32xf32>,
    %c3_i32 = arith.constant 3 : i32
    %24 = arith.addi %2, %c3_i32 : i32
    %25 = arith.index_cast %24 : i32 to index
    %26 = memref.load %arg1[%25] : memref<32xi32, #tpu.memory_space<smem>>
    %27 = arith.index_cast %26 : i32 to index
    %c0_4 = arith.constant 0 : index
    %28 = vector.load %arg2[%27, %c0_4] : memref<64x128xf32, #tpu.memory_space<vmem>>, vector<1x32xf32>
    %29 = arith.index_cast %c0_i32 : i32 to index
    %c96 = arith.constant 96 : index
    %30 = vector.load %arg3[%29, %c96] : memref<8x128xf32, #tpu.memory_space<vmem>>, vector<1x32xf32>
    tpu.vector_store %arg3[%29, %c96], %28 {strides = array<i32>} : memref<8x128xf32, #tpu.memory_space<vmem>>, vector<1x32xf32>,
    %c1_i32_5 = arith.constant 1 : i32
    %c4_i32_6 = arith.constant 4 : i32
    %31 = arith.muli %c1_i32_5, %c4_i32_6 : i32
    %32 = arith.addi %0, %31 : i32
    %c0_i32_7 = arith.constant 0 : i32
    %33 = arith.addi %32, %c0_i32_7 : i32
    %34 = arith.index_cast %33 : i32 to index
    %35 = memref.load %arg1[%34] : memref<32xi32, #tpu.memory_space<smem>>
    %36 = arith.index_cast %35 : i32 to index
    %c0_8 = arith.constant 0 : index
    %37 = vector.load %arg2[%36, %c0_8] : memref<64x128xf32, #tpu.memory_space<vmem>>, vector<1x32xf32>
    %38 = arith.index_cast %c1_i32_5 : i32 to index
    %c0_9 = arith.constant 0 : index
    %39 = vector.load %arg3[%38, %c0_9] : memref<8x128xf32, #tpu.memory_space<vmem>>, vector<1x32xf32>
    tpu.vector_store %arg3[%38, %c0_9], %37 {strides = array<i32>} : memref<8x128xf32, #tpu.memory_space<vmem>>, vector<1x32xf32>,
    %c1_i32_10 = arith.constant 1 : i32
    %40 = arith.addi %32, %c1_i32_10 : i32
    %41 = arith.index_cast %40 : i32 to index
    %42 = memref.load %arg1[%41] : memref<32xi32, #tpu.memory_space<smem>>
    %43 = arith.index_cast %42 : i32 to index
    %c0_11 = arith.constant 0 : index
    %44 = vector.load %arg2[%43, %c0_11] : memref<64x128xf32, #tpu.memory_space<vmem>>, vector<1x32xf32>
    %45 = arith.index_cast %c1_i32_5 : i32 to index
    %c32_12 = arith.constant 32 : index
    %46 = vector.load %arg3[%45, %c32_12] : memref<8x128xf32, #tpu.memory_space<vmem>>, vector<1x32xf32>
    tpu.vector_store %arg3[%45, %c32_12], %44 {strides = array<i32>} : memref<8x128xf32, #tpu.memory_space<vmem>>, vector<1x32xf32>,
    %c2_i32_13 = arith.constant 2 : i32
    %47 = arith.addi %32, %c2_i32_13 : i32
    %48 = arith.index_cast %47 : i32 to index
    %49 = memref.load %arg1[%48] : memref<32xi32, #tpu.memory_space<smem>>
    %50 = arith.index_cast %49 : i32 to index
    %c0_14 = arith.constant 0 : index
    %51 = vector.load %arg2[%50, %c0_14] : memref<64x128xf32, #tpu.memory_space<vmem>>, vector<1x32xf32>
    %52 = arith.index_cast %c1_i32_5 : i32 to index
    %c64_15 = arith.constant 64 : index
    %53 = vector.load %arg3[%52, %c64_15] : memref<8x128xf32, #tpu.memory_space<vmem>>, vector<1x32xf32>
    tpu.vector_store %arg3[%52, %c64_15], %51 {strides = array<i32>} : memref<8x128xf32, #tpu.memory_space<vmem>>, vector<1x32xf32>,
    %c3_i32_16 = arith.constant 3 : i32
    %54 = arith.addi %32, %c3_i32_16 : i32
    %55 = arith.index_cast %54 : i32 to index
    %56 = memref.load %arg1[%55] : memref<32xi32, #tpu.memory_space<smem>>
    %57 = arith.index_cast %56 : i32 to index
    %c0_17 = arith.constant 0 : index
    %58 = vector.load %arg2[%57, %c0_17] : memref<64x128xf32, #tpu.memory_space<vmem>>, vector<1x32xf32>
    %59 = arith.index_cast %c1_i32_5 : i32 to index
    %c96_18 = arith.constant 96 : index
    %60 = vector.load %arg3[%59, %c96_18] : memref<8x128xf32, #tpu.memory_space<vmem>>, vector<1x32xf32>
    tpu.vector_store %arg3[%59, %c96_18], %58 {strides = array<i32>} : memref<8x128xf32, #tpu.memory_space<vmem>>, vector<1x32xf32>,
    %c2_i32_19 = arith.constant 2 : i32
    %c4_i32_20 = arith.constant 4 : i32
    %61 = arith.muli %c2_i32_19, %c4_i32_20 : i32
    %62 = arith.addi %0, %61 : i32
    %c0_i32_21 = arith.constant 0 : i32
    %63 = arith.addi %62, %c0_i32_21 : i32
    %64 = arith.index_cast %63 : i32 to index
    %65 = memref.load %arg1[%64] : memref<32xi32, #tpu.memory_space<smem>>
    %66 = arith.index_cast %65 : i32 to index
    %c0_22 = arith.constant 0 : index
    %67 = vector.load %arg2[%66, %c0_22] : memref<64x128xf32, #tpu.memory_space<vmem>>, vector<1x32xf32>
    %68 = arith.index_cast %c2_i32_19 : i32 to index
    %c0_23 = arith.constant 0 : index
    %69 = vector.load %arg3[%68, %c0_23] : memref<8x128xf32, #tpu.memory_space<vmem>>, vector<1x32xf32>
    tpu.vector_store %arg3[%68, %c0_23], %67 {strides = array<i32>} : memref<8x128xf32, #tpu.memory_space<vmem>>, vector<1x32xf32>,
    %c1_i32_24 = arith.constant 1 : i32
    %70 = arith.addi %62, %c1_i32_24 : i32
    %71 = arith.index_cast %70 : i32 to index
    %72 = memref.load %arg1[%71] : memref<32xi32, #tpu.memory_space<smem>>
    %73 = arith.index_cast %72 : i32 to index
    %c0_25 = arith.constant 0 : index
    %74 = vector.load %arg2[%73, %c0_25] : memref<64x128xf32, #tpu.memory_space<vmem>>, vector<1x32xf32>
    %75 = arith.index_cast %c2_i32_19 : i32 to index
    %c32_26 = arith.constant 32 : index
    %76 = vector.load %arg3[%75, %c32_26] : memref<8x128xf32, #tpu.memory_space<vmem>>, vector<1x32xf32>
    tpu.vector_store %arg3[%75, %c32_26], %74 {strides = array<i32>} : memref<8x128xf32, #tpu.memory_space<vmem>>, vector<1x32xf32>,
    %c2_i32_27 = arith.constant 2 : i32
    %77 = arith.addi %62, %c2_i32_27 : i32
    %78 = arith.index_cast %77 : i32 to index
    %79 = memref.load %arg1[%78] : memref<32xi32, #tpu.memory_space<smem>>
    %80 = arith.index_cast %79 : i32 to index
    %c0_28 = arith.constant 0 : index
    %81 = vector.load %arg2[%80, %c0_28] : memref<64x128xf32, #tpu.memory_space<vmem>>, vector<1x32xf32>
    %82 = arith.index_cast %c2_i32_19 : i32 to index
    %c64_29 = arith.constant 64 : index
    %83 = vector.load %arg3[%82, %c64_29] : memref<8x128xf32, #tpu.memory_space<vmem>>, vector<1x32xf32>
    tpu.vector_store %arg3[%82, %c64_29], %81 {strides = array<i32>} : memref<8x128xf32, #tpu.memory_space<vmem>>, vector<1x32xf32>,
    %c3_i32_30 = arith.constant 3 : i32
    %84 = arith.addi %62, %c3_i32_30 : i32
    %85 = arith.index_cast %84 : i32 to index
    %86 = memref.load %arg1[%85] : memref<32xi32, #tpu.memory_space<smem>>
    %87 = arith.index_cast %86 : i32 to index
    %c0_31 = arith.constant 0 : index
    %88 = vector.load %arg2[%87, %c0_31] : memref<64x128xf32, #tpu.memory_space<vmem>>, vector<1x32xf32>
    %89 = arith.index_cast %c2_i32_19 : i32 to index
    %c96_32 = arith.constant 96 : index
    %90 = vector.load %arg3[%89, %c96_32] : memref<8x128xf32, #tpu.memory_space<vmem>>, vector<1x32xf32>
    tpu.vector_store %arg3[%89, %c96_32], %88 {strides = array<i32>} : memref<8x128xf32, #tpu.memory_space<vmem>>, vector<1x32xf32>,
    %c3_i32_33 = arith.constant 3 : i32
    %c4_i32_34 = arith.constant 4 : i32
    %91 = arith.muli %c3_i32_33, %c4_i32_34 : i32
    %92 = arith.addi %0, %91 : i32
    %c0_i32_35 = arith.constant 0 : i32
    %93 = arith.addi %92, %c0_i32_35 : i32
    %94 = arith.index_cast %93 : i32 to index
    %95 = memref.load %arg1[%94] : memref<32xi32, #tpu.memory_space<smem>>
    %96 = arith.index_cast %95 : i32 to index
    %c0_36 = arith.constant 0 : index
    %97 = vector.load %arg2[%96, %c0_36] : memref<64x128xf32, #tpu.memory_space<vmem>>, vector<1x32xf32>
    %98 = arith.index_cast %c3_i32_33 : i32 to index
    %c0_37 = arith.constant 0 : index
    %99 = vector.load %arg3[%98, %c0_37] : memref<8x128xf32, #tpu.memory_space<vmem>>, vector<1x32xf32>
    tpu.vector_store %arg3[%98, %c0_37], %97 {strides = array<i32>} : memref<8x128xf32, #tpu.memory_space<vmem>>, vector<1x32xf32>,
    %c1_i32_38 = arith.constant 1 : i32
    %100 = arith.addi %92, %c1_i32_38 : i32
    %101 = arith.index_cast %100 : i32 to index
    %102 = memref.load %arg1[%101] : memref<32xi32, #tpu.memory_space<smem>>
    %103 = arith.index_cast %102 : i32 to index
    %c0_39 = arith.constant 0 : index
    %104 = vector.load %arg2[%103, %c0_39] : memref<64x128xf32, #tpu.memory_space<vmem>>, vector<1x32xf32>
    %105 = arith.index_cast %c3_i32_33 : i32 to index
    %c32_40 = arith.constant 32 : index
    %106 = vector.load %arg3[%105, %c32_40] : memref<8x128xf32, #tpu.memory_space<vmem>>, vector<1x32xf32>
    tpu.vector_store %arg3[%105, %c32_40], %104 {strides = array<i32>} : memref<8x128xf32, #tpu.memory_space<vmem>>, vector<1x32xf32>,
    %c2_i32_41 = arith.constant 2 : i32
    %107 = arith.addi %92, %c2_i32_41 : i32
    %108 = arith.index_cast %107 : i32 to index
    %109 = memref.load %arg1[%108] : memref<32xi32, #tpu.memory_space<smem>>
    %110 = arith.index_cast %109 : i32 to index
    %c0_42 = arith.constant 0 : index
    %111 = vector.load %arg2[%110, %c0_42] : memref<64x128xf32, #tpu.memory_space<vmem>>, vector<1x32xf32>
    %112 = arith.index_cast %c3_i32_33 : i32 to index
    %c64_43 = arith.constant 64 : index
    %113 = vector.load %arg3[%112, %c64_43] : memref<8x128xf32, #tpu.memory_space<vmem>>, vector<1x32xf32>
    tpu.vector_store %arg3[%112, %c64_43], %111 {strides = array<i32>} : memref<8x128xf32, #tpu.memory_space<vmem>>, vector<1x32xf32>,
    %c3_i32_44 = arith.constant 3 : i32
    %114 = arith.addi %92, %c3_i32_44 : i32
    %115 = arith.index_cast %114 : i32 to index
    %116 = memref.load %arg1[%115] : memref<32xi32, #tpu.memory_space<smem>>
    %117 = arith.index_cast %116 : i32 to index
    %c0_45 = arith.constant 0 : index
    %118 = vector.load %arg2[%117, %c0_45] : memref<64x128xf32, #tpu.memory_space<vmem>>, vector<1x32xf32>
    %119 = arith.index_cast %c3_i32_33 : i32 to index
    %c96_46 = arith.constant 96 : index
    %120 = vector.load %arg3[%119, %c96_46] : memref<8x128xf32, #tpu.memory_space<vmem>>, vector<1x32xf32>
    tpu.vector_store %arg3[%119, %c96_46], %118 {strides = array<i32>} : memref<8x128xf32, #tpu.memory_space<vmem>>, vector<1x32xf32>,
    %c4_i32_47 = arith.constant 4 : i32
    %c4_i32_48 = arith.constant 4 : i32
    %121 = arith.muli %c4_i32_47, %c4_i32_48 : i32
    %122 = arith.addi %0, %121 : i32
    %c0_i32_49 = arith.constant 0 : i32
    %123 = arith.addi %122, %c0_i32_49 : i32
    %124 = arith.index_cast %123 : i32 to index
    %125 = memref.load %arg1[%124] : memref<32xi32, #tpu.memory_space<smem>>
    %126 = arith.index_cast %125 : i32 to index
    %c0_50 = arith.constant 0 : index
    %127 = vector.load %arg2[%126, %c0_50] : memref<64x128xf32, #tpu.memory_space<vmem>>, vector<1x32xf32>
    %128 = arith.index_cast %c4_i32_47 : i32 to index
    %c0_51 = arith.constant 0 : index
    %129 = vector.load %arg3[%128, %c0_51] : memref<8x128xf32, #tpu.memory_space<vmem>>, vector<1x32xf32>
    tpu.vector_store %arg3[%128, %c0_51], %127 {strides = array<i32>} : memref<8x128xf32, #tpu.memory_space<vmem>>, vector<1x32xf32>,
    %c1_i32_52 = arith.constant 1 : i32
    %130 = arith.addi %122, %c1_i32_52 : i32
    %131 = arith.index_cast %130 : i32 to index
    %132 = memref.load %arg1[%131] : memref<32xi32, #tpu.memory_space<smem>>
    %133 = arith.index_cast %132 : i32 to index
    %c0_53 = arith.constant 0 : index
    %134 = vector.load %arg2[%133, %c0_53] : memref<64x128xf32, #tpu.memory_space<vmem>>, vector<1x32xf32>
    %135 = arith.index_cast %c4_i32_47 : i32 to index
    %c32_54 = arith.constant 32 : index
    %136 = vector.load %arg3[%135, %c32_54] : memref<8x128xf32, #tpu.memory_space<vmem>>, vector<1x32xf32>
    tpu.vector_store %arg3[%135, %c32_54], %134 {strides = array<i32>} : memref<8x128xf32, #tpu.memory_space<vmem>>, vector<1x32xf32>,
    %c2_i32_55 = arith.constant 2 : i32
    %137 = arith.addi %122, %c2_i32_55 : i32
    %138 = arith.index_cast %137 : i32 to index
    %139 = memref.load %arg1[%138] : memref<32xi32, #tpu.memory_space<smem>>
    %140 = arith.index_cast %139 : i32 to index
    %c0_56 = arith.constant 0 : index
    %141 = vector.load %arg2[%140, %c0_56] : memref<64x128xf32, #tpu.memory_space<vmem>>, vector<1x32xf32>
    %142 = arith.index_cast %c4_i32_47 : i32 to index
    %c64_57 = arith.constant 64 : index
    %143 = vector.load %arg3[%142, %c64_57] : memref<8x128xf32, #tpu.memory_space<vmem>>, vector<1x32xf32>
    tpu.vector_store %arg3[%142, %c64_57], %141 {strides = array<i32>} : memref<8x128xf32, #tpu.memory_space<vmem>>, vector<1x32xf32>,
    %c3_i32_58 = arith.constant 3 : i32
    %144 = arith.addi %122, %c3_i32_58 : i32
    %145 = arith.index_cast %144 : i32 to index
    %146 = memref.load %arg1[%145] : memref<32xi32, #tpu.memory_space<smem>>
    %147 = arith.index_cast %146 : i32 to index
    %c0_59 = arith.constant 0 : index
    %148 = vector.load %arg2[%147, %c0_59] : memref<64x128xf32, #tpu.memory_space<vmem>>, vector<1x32xf32>
    %149 = arith.index_cast %c4_i32_47 : i32 to index
    %c96_60 = arith.constant 96 : index
    %150 = vector.load %arg3[%149, %c96_60] : memref<8x128xf32, #tpu.memory_space<vmem>>, vector<1x32xf32>
    tpu.vector_store %arg3[%149, %c96_60], %148 {strides = array<i32>} : memref<8x128xf32, #tpu.memory_space<vmem>>, vector<1x32xf32>,
    %c5_i32 = arith.constant 5 : i32
    %c4_i32_61 = arith.constant 4 : i32
    %151 = arith.muli %c5_i32, %c4_i32_61 : i32
    %152 = arith.addi %0, %151 : i32
    %c0_i32_62 = arith.constant 0 : i32
    %153 = arith.addi %152, %c0_i32_62 : i32
    %154 = arith.index_cast %153 : i32 to index
    %155 = memref.load %arg1[%154] : memref<32xi32, #tpu.memory_space<smem>>
    %156 = arith.index_cast %155 : i32 to index
    %c0_63 = arith.constant 0 : index
    %157 = vector.load %arg2[%156, %c0_63] : memref<64x128xf32, #tpu.memory_space<vmem>>, vector<1x32xf32>
    %158 = arith.index_cast %c5_i32 : i32 to index
    %c0_64 = arith.constant 0 : index
    %159 = vector.load %arg3[%158, %c0_64] : memref<8x128xf32, #tpu.memory_space<vmem>>, vector<1x32xf32>
    tpu.vector_store %arg3[%158, %c0_64], %157 {strides = array<i32>} : memref<8x128xf32, #tpu.memory_space<vmem>>, vector<1x32xf32>,
    %c1_i32_65 = arith.constant 1 : i32
    %160 = arith.addi %152, %c1_i32_65 : i32
    %161 = arith.index_cast %160 : i32 to index
    %162 = memref.load %arg1[%161] : memref<32xi32, #tpu.memory_space<smem>>
    %163 = arith.index_cast %162 : i32 to index
    %c0_66 = arith.constant 0 : index
    %164 = vector.load %arg2[%163, %c0_66] : memref<64x128xf32, #tpu.memory_space<vmem>>, vector<1x32xf32>
    %165 = arith.index_cast %c5_i32 : i32 to index
    %c32_67 = arith.constant 32 : index
    %166 = vector.load %arg3[%165, %c32_67] : memref<8x128xf32, #tpu.memory_space<vmem>>, vector<1x32xf32>
    tpu.vector_store %arg3[%165, %c32_67], %164 {strides = array<i32>} : memref<8x128xf32, #tpu.memory_space<vmem>>, vector<1x32xf32>,
    %c2_i32_68 = arith.constant 2 : i32
    %167 = arith.addi %152, %c2_i32_68 : i32
    %168 = arith.index_cast %167 : i32 to index
    %169 = memref.load %arg1[%168] : memref<32xi32, #tpu.memory_space<smem>>
    %170 = arith.index_cast %169 : i32 to index
    %c0_69 = arith.constant 0 : index
    %171 = vector.load %arg2[%170, %c0_69] : memref<64x128xf32, #tpu.memory_space<vmem>>, vector<1x32xf32>
    %172 = arith.index_cast %c5_i32 : i32 to index
    %c64_70 = arith.constant 64 : index
    %173 = vector.load %arg3[%172, %c64_70] : memref<8x128xf32, #tpu.memory_space<vmem>>, vector<1x32xf32>
    tpu.vector_store %arg3[%172, %c64_70], %171 {strides = array<i32>} : memref<8x128xf32, #tpu.memory_space<vmem>>, vector<1x32xf32>,
    %c3_i32_71 = arith.constant 3 : i32
    %174 = arith.addi %152, %c3_i32_71 : i32
    %175 = arith.index_cast %174 : i32 to index
    %176 = memref.load %arg1[%175] : memref<32xi32, #tpu.memory_space<smem>>
    %177 = arith.index_cast %176 : i32 to index
    %c0_72 = arith.constant 0 : index
    %178 = vector.load %arg2[%177, %c0_72] : memref<64x128xf32, #tpu.memory_space<vmem>>, vector<1x32xf32>
    %179 = arith.index_cast %c5_i32 : i32 to index
    %c96_73 = arith.constant 96 : index
    %180 = vector.load %arg3[%179, %c96_73] : memref<8x128xf32, #tpu.memory_space<vmem>>, vector<1x32xf32>
    tpu.vector_store %arg3[%179, %c96_73], %178 {strides = array<i32>} : memref<8x128xf32, #tpu.memory_space<vmem>>, vector<1x32xf32>,
    %c6_i32 = arith.constant 6 : i32
    %c4_i32_74 = arith.constant 4 : i32
    %181 = arith.muli %c6_i32, %c4_i32_74 : i32
    %182 = arith.addi %0, %181 : i32
    %c0_i32_75 = arith.constant 0 : i32
    %183 = arith.addi %182, %c0_i32_75 : i32
    %184 = arith.index_cast %183 : i32 to index
    %185 = memref.load %arg1[%184] : memref<32xi32, #tpu.memory_space<smem>>
    %186 = arith.index_cast %185 : i32 to index
    %c0_76 = arith.constant 0 : index
    %187 = vector.load %arg2[%186, %c0_76] : memref<64x128xf32, #tpu.memory_space<vmem>>, vector<1x32xf32>
    %188 = arith.index_cast %c6_i32 : i32 to index
    %c0_77 = arith.constant 0 : index
    %189 = vector.load %arg3[%188, %c0_77] : memref<8x128xf32, #tpu.memory_space<vmem>>, vector<1x32xf32>
    tpu.vector_store %arg3[%188, %c0_77], %187 {strides = array<i32>} : memref<8x128xf32, #tpu.memory_space<vmem>>, vector<1x32xf32>,
    %c1_i32_78 = arith.constant 1 : i32
    %190 = arith.addi %182, %c1_i32_78 : i32
    %191 = arith.index_cast %190 : i32 to index
    %192 = memref.load %arg1[%191] : memref<32xi32, #tpu.memory_space<smem>>
    %193 = arith.index_cast %192 : i32 to index
    %c0_79 = arith.constant 0 : index
    %194 = vector.load %arg2[%193, %c0_79] : memref<64x128xf32, #tpu.memory_space<vmem>>, vector<1x32xf32>
    %195 = arith.index_cast %c6_i32 : i32 to index
    %c32_80 = arith.constant 32 : index
    %196 = vector.load %arg3[%195, %c32_80] : memref<8x128xf32, #tpu.memory_space<vmem>>, vector<1x32xf32>
    tpu.vector_store %arg3[%195, %c32_80], %194 {strides = array<i32>} : memref<8x128xf32, #tpu.memory_space<vmem>>, vector<1x32xf32>,
    %c2_i32_81 = arith.constant 2 : i32
    %197 = arith.addi %182, %c2_i32_81 : i32
    %198 = arith.index_cast %197 : i32 to index
    %199 = memref.load %arg1[%198] : memref<32xi32, #tpu.memory_space<smem>>
    %200 = arith.index_cast %199 : i32 to index
    %c0_82 = arith.constant 0 : index
    %201 = vector.load %arg2[%200, %c0_82] : memref<64x128xf32, #tpu.memory_space<vmem>>, vector<1x32xf32>
    %202 = arith.index_cast %c6_i32 : i32 to index
    %c64_83 = arith.constant 64 : index
    %203 = vector.load %arg3[%202, %c64_83] : memref<8x128xf32, #tpu.memory_space<vmem>>, vector<1x32xf32>
    tpu.vector_store %arg3[%202, %c64_83], %201 {strides = array<i32>} : memref<8x128xf32, #tpu.memory_space<vmem>>, vector<1x32xf32>,
    %c3_i32_84 = arith.constant 3 : i32
    %204 = arith.addi %182, %c3_i32_84 : i32
    %205 = arith.index_cast %204 : i32 to index
    %206 = memref.load %arg1[%205] : memref<32xi32, #tpu.memory_space<smem>>
    %207 = arith.index_cast %206 : i32 to index
    %c0_85 = arith.constant 0 : index
    %208 = vector.load %arg2[%207, %c0_85] : memref<64x128xf32, #tpu.memory_space<vmem>>, vector<1x32xf32>
    %209 = arith.index_cast %c6_i32 : i32 to index
    %c96_86 = arith.constant 96 : index
    %210 = vector.load %arg3[%209, %c96_86] : memref<8x128xf32, #tpu.memory_space<vmem>>, vector<1x32xf32>
    tpu.vector_store %arg3[%209, %c96_86], %208 {strides = array<i32>} : memref<8x128xf32, #tpu.memory_space<vmem>>, vector<1x32xf32>,
    %c7_i32 = arith.constant 7 : i32
    %c4_i32_87 = arith.constant 4 : i32
    %211 = arith.muli %c7_i32, %c4_i32_87 : i32
    %212 = arith.addi %0, %211 : i32
    %c0_i32_88 = arith.constant 0 : i32
    %213 = arith.addi %212, %c0_i32_88 : i32
    %214 = arith.index_cast %213 : i32 to index
    %215 = memref.load %arg1[%214] : memref<32xi32, #tpu.memory_space<smem>>
    %216 = arith.index_cast %215 : i32 to index
    %c0_89 = arith.constant 0 : index
    %217 = vector.load %arg2[%216, %c0_89] : memref<64x128xf32, #tpu.memory_space<vmem>>, vector<1x32xf32>
    %218 = arith.index_cast %c7_i32 : i32 to index
    %c0_90 = arith.constant 0 : index
    %219 = vector.load %arg3[%218, %c0_90] : memref<8x128xf32, #tpu.memory_space<vmem>>, vector<1x32xf32>
    tpu.vector_store %arg3[%218, %c0_90], %217 {strides = array<i32>} : memref<8x128xf32, #tpu.memory_space<vmem>>, vector<1x32xf32>,
    %c1_i32_91 = arith.constant 1 : i32
    %220 = arith.addi %212, %c1_i32_91 : i32
    %221 = arith.index_cast %220 : i32 to index
    %222 = memref.load %arg1[%221] : memref<32xi32, #tpu.memory_space<smem>>
    %223 = arith.index_cast %222 : i32 to index
    %c0_92 = arith.constant 0 : index
    %224 = vector.load %arg2[%223, %c0_92] : memref<64x128xf32, #tpu.memory_space<vmem>>, vector<1x32xf32>
    %225 = arith.index_cast %c7_i32 : i32 to index
    %c32_93 = arith.constant 32 : index
    %226 = vector.load %arg3[%225, %c32_93] : memref<8x128xf32, #tpu.memory_space<vmem>>, vector<1x32xf32>
    tpu.vector_store %arg3[%225, %c32_93], %224 {strides = array<i32>} : memref<8x128xf32, #tpu.memory_space<vmem>>, vector<1x32xf32>,
    %c2_i32_94 = arith.constant 2 : i32
    %227 = arith.addi %212, %c2_i32_94 : i32
    %228 = arith.index_cast %227 : i32 to index
    %229 = memref.load %arg1[%228] : memref<32xi32, #tpu.memory_space<smem>>
    %230 = arith.index_cast %229 : i32 to index
    %c0_95 = arith.constant 0 : index
    %231 = vector.load %arg2[%230, %c0_95] : memref<64x128xf32, #tpu.memory_space<vmem>>, vector<1x32xf32>
    %232 = arith.index_cast %c7_i32 : i32 to index
    %c64_96 = arith.constant 64 : index
    %233 = vector.load %arg3[%232, %c64_96] : memref<8x128xf32, #tpu.memory_space<vmem>>, vector<1x32xf32>
    tpu.vector_store %arg3[%232, %c64_96], %231 {strides = array<i32>} : memref<8x128xf32, #tpu.memory_space<vmem>>, vector<1x32xf32>,
    %c3_i32_97 = arith.constant 3 : i32
    %234 = arith.addi %212, %c3_i32_97 : i32
    %235 = arith.index_cast %234 : i32 to index
    %236 = memref.load %arg1[%235] : memref<32xi32, #tpu.memory_space<smem>>
    %237 = arith.index_cast %236 : i32 to index
    %c0_98 = arith.constant 0 : index
    %238 = vector.load %arg2[%237, %c0_98] : memref<64x128xf32, #tpu.memory_space<vmem>>, vector<1x32xf32>
    %239 = arith.index_cast %c7_i32 : i32 to index
    %c96_99 = arith.constant 96 : index
    %240 = vector.load %arg3[%239, %c96_99] : memref<8x128xf32, #tpu.memory_space<vmem>>, vector<1x32xf32>
    tpu.vector_store %arg3[%239, %c96_99], %238 {strides = array<i32>} : memref<8x128xf32, #tpu.memory_space<vmem>>, vector<1x32xf32>,
    %c8_i32 = arith.constant 8 : i32
    return
  }
  func.func @transform_0(%arg0: i32, %arg1: memref<32xi32, #tpu.memory_space<smem>>) -> (i32, i32) {
    %c0_i32 = arith.constant 0 : i32
    %c0_i32_0 = arith.constant 0 : i32
    %c0_i32_1 = arith.constant 0 : i32
    return %c0_i32, %c0_i32_0 : i32, i32
  }
  func.func @transform_1(%arg0: i32, %arg1: memref<32xi32, #tpu.memory_space<smem>>) -> (i32, i32) {
    %c0_i32 = arith.constant 0 : i32
    %c0_i32_0 = arith.constant 0 : i32
    return %arg0, %c0_i32 : i32, i32
  }
}

module attributes {stable_mosaic.version = 11 : i64} {
  func.func @_gather_vmem_packed_kernel(%arg0: i32, %arg1: memref<32xi32, #tpu.memory_space<smem>>, %arg2: memref<64x128xf32, #tpu.memory_space<vmem>>, %arg3: memref<8x128xf32, #tpu.memory_space<vmem>>) attributes {dimension_semantics = [#tpu.dimension_semantics<parallel>], iteration_bounds = array<i64: 1>, scalar_prefetch = 1 : i64, scratch_operands = 0 : i64, tpu.core_type = #tpu.core_type<tc>, window_params = [{pipeline_mode = #tpu.pipeline_mode<synchronous>, transform_indices = @transform_0, window_bounds = array<i64: 64, 128>}, {transform_indices = @transform_1, window_bounds = array<i64: 8, 128>}]} {
    %c32_i32 = arith.constant 32 : i32
    %0 = arith.muli %arg0, %c32_i32 : i32
    %c0_i32 = arith.constant 0 : i32
    %c4_i32 = arith.constant 4 : i32
    %1 = arith.muli %c0_i32, %c4_i32 : i32
    %2 = arith.addi %0, %1 : i32
    %c0_i32_0 = arith.constant 0 : i32
    %3 = arith.addi %2, %c0_i32_0 : i32
    %4 = arith.index_cast %3 : i32 to index
    %5 = memref.load %arg1[%4] : memref<32xi32, #tpu.memory_space<smem>>
    %6 = arith.index_cast %5 : i32 to index
    %c0 = arith.constant 0 : index
    %7 = vector.load %arg2[%6, %c0] : memref<64x128xf32, #tpu.memory_space<vmem>>, vector<1x32xf32>
    %8 = arith.index_cast %c0_i32 : i32 to index
    %c0_1 = arith.constant 0 : index
    %9 = vector.load %arg3[%8, %c0_1] : memref<8x128xf32, #tpu.memory_space<vmem>>, vector<1x32xf32>
    tpu.vector_store %arg3[%8, %c0_1], %7 {strides = array<i32>} : memref<8x128xf32, #tpu.memory_space<vmem>>, vector<1x32xf32>,
    %c1_i32 = arith.constant 1 : i32
    %10 = arith.addi %2, %c1_i32 : i32
    %11 = arith.index_cast %10 : i32 to index
    %12 = memref.load %arg1[%11] : memref<32xi32, #tpu.memory_space<smem>>
    %13 = arith.index_cast %12 : i32 to index
    %c0_2 = arith.constant 0 : index
    %14 = vector.load %arg2[%13, %c0_2] : memref<64x128xf32, #tpu.memory_space<vmem>>, vector<1x32xf32>
    %15 = arith.index_cast %c0_i32 : i32 to index
    %c32 = arith.constant 32 : index
    %16 = vector.load %arg3[%15, %c32] : memref<8x128xf32, #tpu.memory_space<vmem>>, vector<1x32xf32>
    tpu.vector_store %arg3[%15, %c32], %14 {strides = array<i32>} : memref<8x128xf32, #tpu.memory_space<vmem>>, vector<1x32xf32>,
    %c2_i32 = arith.constant 2 : i32
    %17 = arith.addi %2, %c2_i32 : i32
    %18 = arith.index_cast %17 : i32 to index
    %19 = memref.load %arg1[%18] : memref<32xi32, #tpu.memory_space<smem>>
    %20 = arith.index_cast %19 : i32 to index
    %c0_3 = arith.constant 0 : index
    %21 = vector.load %arg2[%20, %c0_3] : memref<64x128xf32, #tpu.memory_space<vmem>>, vector<1x32xf32>
    %22 = arith.index_cast %c0_i32 : i32 to index
    %c64 = arith.constant 64 : index
    %23 = vector.load %arg3[%22, %c64] : memref<8x128xf32, #tpu.memory_space<vmem>>, vector<1x32xf32>
    tpu.vector_store %arg3[%22, %c64], %21 {strides = array<i32>} : memref<8x128xf32, #tpu.memory_space<vmem>>, vector<1x32xf32>,
    %c3_i32 = arith.constant 3 : i32
    %24 = arith.addi %2, %c3_i32 : i32
    %25 = arith.index_cast %24 : i32 to index
    %26 = memref.load %arg1[%25] : memref<32xi32, #tpu.memory_space<smem>>
    %27 = arith.index_cast %26 : i32 to index
    %c0_4 = arith.constant 0 : index
    %28 = vector.load %arg2[%27, %c0_4] : memref<64x128xf32, #tpu.memory_space<vmem>>, vector<1x32xf32>
    %29 = arith.index_cast %c0_i32 : i32 to index
    %c96 = arith.constant 96 : index
    %30 = vector.load %arg3[%29, %c96] : memref<8x128xf32, #tpu.memory_space<vmem>>, vector<1x32xf32>
    tpu.vector_store %arg3[%29, %c96], %28 {strides = array<i32>} : memref<8x128xf32, #tpu.memory_space<vmem>>, vector<1x32xf32>,
    %c1_i32_5 = arith.constant 1 : i32
    %c4_i32_6 = arith.constant 4 : i32
    %31 = arith.muli %c1_i32_5, %c4_i32_6 : i32
    %32 = arith.addi %0, %31 : i32
    %c0_i32_7 = arith.constant 0 : i32
    %33 = arith.addi %32, %c0_i32_7 : i32
    %34 = arith.index_cast %33 : i32 to index
    %35 = memref.load %arg1[%34] : memref<32xi32, #tpu.memory_space<smem>>
    %36 = arith.index_cast %35 : i32 to index
    %c0_8 = arith.constant 0 : index
    %37 = vector.load %arg2[%36, %c0_8] : memref<64x128xf32, #tpu.memory_space<vmem>>, vector<1x32xf32>
    %38 = arith.index_cast %c1_i32_5 : i32 to index
    %c0_9 = arith.constant 0 : index
    %39 = vector.load %arg3[%38, %c0_9] : memref<8x128xf32, #tpu.memory_space<vmem>>, vector<1x32xf32>
    tpu.vector_store %arg3[%38, %c0_9], %37 {strides = array<i32>} : memref<8x128xf32, #tpu.memory_space<vmem>>, vector<1x32xf32>,
    %c1_i32_10 = arith.constant 1 : i32
    %40 = arith.addi %32, %c1_i32_10 : i32
    %41 = arith.index_cast %40 : i32 to index
    %42 = memref.load %arg1[%41] : memref<32xi32, #tpu.memory_space<smem>>
    %43 = arith.index_cast %42 : i32 to index
    %c0_11 = arith.constant 0 : index
    %44 = vector.load %arg2[%43, %c0_11] : memref<64x128xf32, #tpu.memory_space<vmem>>, vector<1x32xf32>
    %45 = arith.index_cast %c1_i32_5 : i32 to index
    %c32_12 = arith.constant 32 : index
    %46 = vector.load %arg3[%45, %c32_12] : memref<8x128xf32, #tpu.memory_space<vmem>>, vector<1x32xf32>
    tpu.vector_store %arg3[%45, %c32_12], %44 {strides = array<i32>} : memref<8x128xf32, #tpu.memory_space<vmem>>, vector<1x32xf32>,
    %c2_i32_13 = arith.constant 2 : i32
    %47 = arith.addi %32, %c2_i32_13 : i32
    %48 = arith.index_cast %47 : i32 to index
    %49 = memref.load %arg1[%48] : memref<32xi32, #tpu.memory_space<smem>>
    %50 = arith.index_cast %49 : i32 to index
    %c0_14 = arith.constant 0 : index
    %51 = vector.load %arg2[%50, %c0_14] : memref<64x128xf32, #tpu.memory_space<vmem>>, vector<1x32xf32>
    %52 = arith.index_cast %c1_i32_5 : i32 to index
    %c64_15 = arith.constant 64 : index
    %53 = vector.load %arg3[%52, %c64_15] : memref<8x128xf32, #tpu.memory_space<vmem>>, vector<1x32xf32>
    tpu.vector_store %arg3[%52, %c64_15], %51 {strides = array<i32>} : memref<8x128xf32, #tpu.memory_space<vmem>>, vector<1x32xf32>,
    %c3_i32_16 = arith.constant 3 : i32
    %54 = arith.addi %32, %c3_i32_16 : i32
    %55 = arith.index_cast %54 : i32 to index
    %56 = memref.load %arg1[%55] : memref<32xi32, #tpu.memory_space<smem>>
    %57 = arith.index_cast %56 : i32 to index
    %c0_17 = arith.constant 0 : index
    %58 = vector.load %arg2[%57, %c0_17] : memref<64x128xf32, #tpu.memory_space<vmem>>, vector<1x32xf32>
    %59 = arith.index_cast %c1_i32_5 : i32 to index
    %c96_18 = arith.constant 96 : index
    %60 = vector.load %arg3[%59, %c96_18] : memref<8x128xf32, #tpu.memory_space<vmem>>, vector<1x32xf32>
    tpu.vector_store %arg3[%59, %c96_18], %58 {strides = array<i32>} : memref<8x128xf32, #tpu.memory_space<vmem>>, vector<1x32xf32>,
    %c2_i32_19 = arith.constant 2 : i32
    %c4_i32_20 = arith.constant 4 : i32
    %61 = arith.muli %c2_i32_19, %c4_i32_20 : i32
    %62 = arith.addi %0, %61 : i32
    %c0_i32_21 = arith.constant 0 : i32
    %63 = arith.addi %62, %c0_i32_21 : i32
    %64 = arith.index_cast %63 : i32 to index
    %65 = memref.load %arg1[%64] : memref<32xi32, #tpu.memory_space<smem>>
    %66 = arith.index_cast %65 : i32 to index
    %c0_22 = arith.constant 0 : index
    %67 = vector.load %arg2[%66, %c0_22] : memref<64x128xf32, #tpu.memory_space<vmem>>, vector<1x32xf32>
    %68 = arith.index_cast %c2_i32_19 : i32 to index
    %c0_23 = arith.constant 0 : index
    %69 = vector.load %arg3[%68, %c0_23] : memref<8x128xf32, #tpu.memory_space<vmem>>, vector<1x32xf32>
    tpu.vector_store %arg3[%68, %c0_23], %67 {strides = array<i32>} : memref<8x128xf32, #tpu.memory_space<vmem>>, vector<1x32xf32>,
    %c1_i32_24 = arith.constant 1 : i32
    %70 = arith.addi %62, %c1_i32_24 : i32
    %71 = arith.index_cast %70 : i32 to index
    %72 = memref.load %arg1[%71] : memref<32xi32, #tpu.memory_space<smem>>
    %73 = arith.index_cast %72 : i32 to index
    %c0_25 = arith.constant 0 : index
    %74 = vector.load %arg2[%73, %c0_25] : memref<64x128xf32, #tpu.memory_space<vmem>>, vector<1x32xf32>
    %75 = arith.index_cast %c2_i32_19 : i32 to index
    %c32_26 = arith.constant 32 : index
    %76 = vector.load %arg3[%75, %c32_26] : memref<8x128xf32, #tpu.memory_space<vmem>>, vector<1x32xf32>
    tpu.vector_store %arg3[%75, %c32_26], %74 {strides = array<i32>} : memref<8x128xf32, #tpu.memory_space<vmem>>, vector<1x32xf32>,
    %c2_i32_27 = arith.constant 2 : i32
    %77 = arith.addi %62, %c2_i32_27 : i32
    %78 = arith.index_cast %77 : i32 to index
    %79 = memref.load %arg1[%78] : memref<32xi32, #tpu.memory_space<smem>>
    %80 = arith.index_cast %79 : i32 to index
    %c0_28 = arith.constant 0 : index
    %81 = vector.load %arg2[%80, %c0_28] : memref<64x128xf32, #tpu.memory_space<vmem>>, vector<1x32xf32>
    %82 = arith.index_cast %c2_i32_19 : i32 to index
    %c64_29 = arith.constant 64 : index
    %83 = vector.load %arg3[%82, %c64_29] : memref<8x128xf32, #tpu.memory_space<vmem>>, vector<1x32xf32>
    tpu.vector_store %arg3[%82, %c64_29], %81 {strides = array<i32>} : memref<8x128xf32, #tpu.memory_space<vmem>>, vector<1x32xf32>,
    %c3_i32_30 = arith.constant 3 : i32
    %84 = arith.addi %62, %c3_i32_30 : i32
    %85 = arith.index_cast %84 : i32 to index
    %86 = memref.load %arg1[%85] : memref<32xi32, #tpu.memory_space<smem>>
    %87 = arith.index_cast %86 : i32 to index
    %c0_31 = arith.constant 0 : index
    %88 = vector.load %arg2[%87, %c0_31] : memref<64x128xf32, #tpu.memory_space<vmem>>, vector<1x32xf32>
    %89 = arith.index_cast %c2_i32_19 : i32 to index
    %c96_32 = arith.constant 96 : index
    %90 = vector.load %arg3[%89, %c96_32] : memref<8x128xf32, #tpu.memory_space<vmem>>, vector<1x32xf32>
    tpu.vector_store %arg3[%89, %c96_32], %88 {strides = array<i32>} : memref<8x128xf32, #tpu.memory_space<vmem>>, vector<1x32xf32>,
    %c3_i32_33 = arith.constant 3 : i32
    %c4_i32_34 = arith.constant 4 : i32
    %91 = arith.muli %c3_i32_33, %c4_i32_34 : i32
    %92 = arith.addi %0, %91 : i32
    %c0_i32_35 = arith.constant 0 : i32
    %93 = arith.addi %92, %c0_i32_35 : i32
    %94 = arith.index_cast %93 : i32 to index
    %95 = memref.load %arg1[%94] : memref<32xi32, #tpu.memory_space<smem>>
    %96 = arith.index_cast %95 : i32 to index
    %c0_36 = arith.constant 0 : index
    %97 = vector.load %arg2[%96, %c0_36] : memref<64x128xf32, #tpu.memory_space<vmem>>, vector<1x32xf32>
    %98 = arith.index_cast %c3_i32_33 : i32 to index
    %c0_37 = arith.constant 0 : index
    %99 = vector.load %arg3[%98, %c0_37] : memref<8x128xf32, #tpu.memory_space<vmem>>, vector<1x32xf32>
    tpu.vector_store %arg3[%98, %c0_37], %97 {strides = array<i32>} : memref<8x128xf32, #tpu.memory_space<vmem>>, vector<1x32xf32>,
    %c1_i32_38 = arith.constant 1 : i32
    %100 = arith.addi %92, %c1_i32_38 : i32
    %101 = arith.index_cast %100 : i32 to index
    %102 = memref.load %arg1[%101] : memref<32xi32, #tpu.memory_space<smem>>
    %103 = arith.index_cast %102 : i32 to index
    %c0_39 = arith.constant 0 : index
    %104 = vector.load %arg2[%103, %c0_39] : memref<64x128xf32, #tpu.memory_space<vmem>>, vector<1x32xf32>
    %105 = arith.index_cast %c3_i32_33 : i32 to index
    %c32_40 = arith.constant 32 : index
    %106 = vector.load %arg3[%105, %c32_40] : memref<8x128xf32, #tpu.memory_space<vmem>>, vector<1x32xf32>
    tpu.vector_store %arg3[%105, %c32_40], %104 {strides = array<i32>} : memref<8x128xf32, #tpu.memory_space<vmem>>, vector<1x32xf32>,
    %c2_i32_41 = arith.constant 2 : i32
    %107 = arith.addi %92, %c2_i32_41 : i32
    %108 = arith.index_cast %107 : i32 to index
    %109 = memref.load %arg1[%108] : memref<32xi32, #tpu.memory_space<smem>>
    %110 = arith.index_cast %109 : i32 to index
    %c0_42 = arith.constant 0 : index
    %111 = vector.load %arg2[%110, %c0_42] : memref<64x128xf32, #tpu.memory_space<vmem>>, vector<1x32xf32>
    %112 = arith.index_cast %c3_i32_33 : i32 to index
    %c64_43 = arith.constant 64 : index
    %113 = vector.load %arg3[%112, %c64_43] : memref<8x128xf32, #tpu.memory_space<vmem>>, vector<1x32xf32>
    tpu.vector_store %arg3[%112, %c64_43], %111 {strides = array<i32>} : memref<8x128xf32, #tpu.memory_space<vmem>>, vector<1x32xf32>,
    %c3_i32_44 = arith.constant 3 : i32
    %114 = arith.addi %92, %c3_i32_44 : i32
    %115 = arith.index_cast %114 : i32 to index
    %116 = memref.load %arg1[%115] : memref<32xi32, #tpu.memory_space<smem>>
    %117 = arith.index_cast %116 : i32 to index
    %c0_45 = arith.constant 0 : index
    %118 = vector.load %arg2[%117, %c0_45] : memref<64x128xf32, #tpu.memory_space<vmem>>, vector<1x32xf32>
    %119 = arith.index_cast %c3_i32_33 : i32 to index
    %c96_46 = arith.constant 96 : index
    %120 = vector.load %arg3[%119, %c96_46] : memref<8x128xf32, #tpu.memory_space<vmem>>, vector<1x32xf32>
    tpu.vector_store %arg3[%119, %c96_46], %118 {strides = array<i32>} : memref<8x128xf32, #tpu.memory_space<vmem>>, vector<1x32xf32>,
    %c4_i32_47 = arith.constant 4 : i32
    %c4_i32_48 = arith.constant 4 : i32
    %121 = arith.muli %c4_i32_47, %c4_i32_48 : i32
    %122 = arith.addi %0, %121 : i32
    %c0_i32_49 = arith.constant 0 : i32
    %123 = arith.addi %122, %c0_i32_49 : i32
    %124 = arith.index_cast %123 : i32 to index
    %125 = memref.load %arg1[%124] : memref<32xi32, #tpu.memory_space<smem>>
    %126 = arith.index_cast %125 : i32 to index
    %c0_50 = arith.constant 0 : index
    %127 = vector.load %arg2[%126, %c0_50] : memref<64x128xf32, #tpu.memory_space<vmem>>, vector<1x32xf32>
    %128 = arith.index_cast %c4_i32_47 : i32 to index
    %c0_51 = arith.constant 0 : index
    %129 = vector.load %arg3[%128, %c0_51] : memref<8x128xf32, #tpu.memory_space<vmem>>, vector<1x32xf32>
    tpu.vector_store %arg3[%128, %c0_51], %127 {strides = array<i32>} : memref<8x128xf32, #tpu.memory_space<vmem>>, vector<1x32xf32>,
    %c1_i32_52 = arith.constant 1 : i32
    %130 = arith.addi %122, %c1_i32_52 : i32
    %131 = arith.index_cast %130 : i32 to index
    %132 = memref.load %arg1[%131] : memref<32xi32, #tpu.memory_space<smem>>
    %133 = arith.index_cast %132 : i32 to index
    %c0_53 = arith.constant 0 : index
    %134 = vector.load %arg2[%133, %c0_53] : memref<64x128xf32, #tpu.memory_space<vmem>>, vector<1x32xf32>
    %135 = arith.index_cast %c4_i32_47 : i32 to index
    %c32_54 = arith.constant 32 : index
    %136 = vector.load %arg3[%135, %c32_54] : memref<8x128xf32, #tpu.memory_space<vmem>>, vector<1x32xf32>
    tpu.vector_store %arg3[%135, %c32_54], %134 {strides = array<i32>} : memref<8x128xf32, #tpu.memory_space<vmem>>, vector<1x32xf32>,
    %c2_i32_55 = arith.constant 2 : i32
    %137 = arith.addi %122, %c2_i32_55 : i32
    %138 = arith.index_cast %137 : i32 to index
    %139 = memref.load %arg1[%138] : memref<32xi32, #tpu.memory_space<smem>>
    %140 = arith.index_cast %139 : i32 to index
    %c0_56 = arith.constant 0 : index
    %141 = vector.load %arg2[%140, %c0_56] : memref<64x128xf32, #tpu.memory_space<vmem>>, vector<1x32xf32>
    %142 = arith.index_cast %c4_i32_47 : i32 to index
    %c64_57 = arith.constant 64 : index
    %143 = vector.load %arg3[%142, %c64_57] : memref<8x128xf32, #tpu.memory_space<vmem>>, vector<1x32xf32>
    tpu.vector_store %arg3[%142, %c64_57], %141 {strides = array<i32>} : memref<8x128xf32, #tpu.memory_space<vmem>>, vector<1x32xf32>,
    %c3_i32_58 = arith.constant 3 : i32
    %144 = arith.addi %122, %c3_i32_58 : i32
    %145 = arith.index_cast %144 : i32 to index
    %146 = memref.load %arg1[%145] : memref<32xi32, #tpu.memory_space<smem>>
    %147 = arith.index_cast %146 : i32 to index
    %c0_59 = arith.constant 0 : index
    %148 = vector.load %arg2[%147, %c0_59] : memref<64x128xf32, #tpu.memory_space<vmem>>, vector<1x32xf32>
    %149 = arith.index_cast %c4_i32_47 : i32 to index
    %c96_60 = arith.constant 96 : index
    %150 = vector.load %arg3[%149, %c96_60] : memref<8x128xf32, #tpu.memory_space<vmem>>, vector<1x32xf32>
    tpu.vector_store %arg3[%149, %c96_60], %148 {strides = array<i32>} : memref<8x128xf32, #tpu.memory_space<vmem>>, vector<1x32xf32>,
    %c5_i32 = arith.constant 5 : i32
    %c4_i32_61 = arith.constant 4 : i32
    %151 = arith.muli %c5_i32, %c4_i32_61 : i32
    %152 = arith.addi %0, %151 : i32
    %c0_i32_62 = arith.constant 0 : i32
    %153 = arith.addi %152, %c0_i32_62 : i32
    %154 = arith.index_cast %153 : i32 to index
    %155 = memref.load %arg1[%154] : memref<32xi32, #tpu.memory_space<smem>>
    %156 = arith.index_cast %155 : i32 to index
    %c0_63 = arith.constant 0 : index
    %157 = vector.load %arg2[%156, %c0_63] : memref<64x128xf32, #tpu.memory_space<vmem>>, vector<1x32xf32>
    %158 = arith.index_cast %c5_i32 : i32 to index
    %c0_64 = arith.constant 0 : index
    %159 = vector.load %arg3[%158, %c0_64] : memref<8x128xf32, #tpu.memory_space<vmem>>, vector<1x32xf32>
    tpu.vector_store %arg3[%158, %c0_64], %157 {strides = array<i32>} : memref<8x128xf32, #tpu.memory_space<vmem>>, vector<1x32xf32>,
    %c1_i32_65 = arith.constant 1 : i32
    %160 = arith.addi %152, %c1_i32_65 : i32
    %161 = arith.index_cast %160 : i32 to index
    %162 = memref.load %arg1[%161] : memref<32xi32, #tpu.memory_space<smem>>
    %163 = arith.index_cast %162 : i32 to index
    %c0_66 = arith.constant 0 : index
    %164 = vector.load %arg2[%163, %c0_66] : memref<64x128xf32, #tpu.memory_space<vmem>>, vector<1x32xf32>
    %165 = arith.index_cast %c5_i32 : i32 to index
    %c32_67 = arith.constant 32 : index
    %166 = vector.load %arg3[%165, %c32_67] : memref<8x128xf32, #tpu.memory_space<vmem>>, vector<1x32xf32>
    tpu.vector_store %arg3[%165, %c32_67], %164 {strides = array<i32>} : memref<8x128xf32, #tpu.memory_space<vmem>>, vector<1x32xf32>,
    %c2_i32_68 = arith.constant 2 : i32
    %167 = arith.addi %152, %c2_i32_68 : i32
    %168 = arith.index_cast %167 : i32 to index
    %169 = memref.load %arg1[%168] : memref<32xi32, #tpu.memory_space<smem>>
    %170 = arith.index_cast %169 : i32 to index
    %c0_69 = arith.constant 0 : index
    %171 = vector.load %arg2[%170, %c0_69] : memref<64x128xf32, #tpu.memory_space<vmem>>, vector<1x32xf32>
    %172 = arith.index_cast %c5_i32 : i32 to index
    %c64_70 = arith.constant 64 : index
    %173 = vector.load %arg3[%172, %c64_70] : memref<8x128xf32, #tpu.memory_space<vmem>>, vector<1x32xf32>
    tpu.vector_store %arg3[%172, %c64_70], %171 {strides = array<i32>} : memref<8x128xf32, #tpu.memory_space<vmem>>, vector<1x32xf32>,
    %c3_i32_71 = arith.constant 3 : i32
    %174 = arith.addi %152, %c3_i32_71 : i32
    %175 = arith.index_cast %174 : i32 to index
    %176 = memref.load %arg1[%175] : memref<32xi32, #tpu.memory_space<smem>>
    %177 = arith.index_cast %176 : i32 to index
    %c0_72 = arith.constant 0 : index
    %178 = vector.load %arg2[%177, %c0_72] : memref<64x128xf32, #tpu.memory_space<vmem>>, vector<1x32xf32>
    %179 = arith.index_cast %c5_i32 : i32 to index
    %c96_73 = arith.constant 96 : index
    %180 = vector.load %arg3[%179, %c96_73] : memref<8x128xf32, #tpu.memory_space<vmem>>, vector<1x32xf32>
    tpu.vector_store %arg3[%179, %c96_73], %178 {strides = array<i32>} : memref<8x128xf32, #tpu.memory_space<vmem>>, vector<1x32xf32>,
    %c6_i32 = arith.constant 6 : i32
    %c4_i32_74 = arith.constant 4 : i32
    %181 = arith.muli %c6_i32, %c4_i32_74 : i32
    %182 = arith.addi %0, %181 : i32
    %c0_i32_75 = arith.constant 0 : i32
    %183 = arith.addi %182, %c0_i32_75 : i32
    %184 = arith.index_cast %183 : i32 to index
    %185 = memref.load %arg1[%184] : memref<32xi32, #tpu.memory_space<smem>>
    %186 = arith.index_cast %185 : i32 to index
    %c0_76 = arith.constant 0 : index
    %187 = vector.load %arg2[%186, %c0_76] : memref<64x128xf32, #tpu.memory_space<vmem>>, vector<1x32xf32>
    %188 = arith.index_cast %c6_i32 : i32 to index
    %c0_77 = arith.constant 0 : index
    %189 = vector.load %arg3[%188, %c0_77] : memref<8x128xf32, #tpu.memory_space<vmem>>, vector<1x32xf32>
    tpu.vector_store %arg3[%188, %c0_77], %187 {strides = array<i32>} : memref<8x128xf32, #tpu.memory_space<vmem>>, vector<1x32xf32>,
    %c1_i32_78 = arith.constant 1 : i32
    %190 = arith.addi %182, %c1_i32_78 : i32
    %191 = arith.index_cast %190 : i32 to index
    %192 = memref.load %arg1[%191] : memref<32xi32, #tpu.memory_space<smem>>
    %193 = arith.index_cast %192 : i32 to index
    %c0_79 = arith.constant 0 : index
    %194 = vector.load %arg2[%193, %c0_79] : memref<64x128xf32, #tpu.memory_space<vmem>>, vector<1x32xf32>
    %195 = arith.index_cast %c6_i32 : i32 to index
    %c32_80 = arith.constant 32 : index
    %196 = vector.load %arg3[%195, %c32_80] : memref<8x128xf32, #tpu.memory_space<vmem>>, vector<1x32xf32>
    tpu.vector_store %arg3[%195, %c32_80], %194 {strides = array<i32>} : memref<8x128xf32, #tpu.memory_space<vmem>>, vector<1x32xf32>,
    %c2_i32_81 = arith.constant 2 : i32
    %197 = arith.addi %182, %c2_i32_81 : i32
    %198 = arith.index_cast %197 : i32 to index
    %199 = memref.load %arg1[%198] : memref<32xi32, #tpu.memory_space<smem>>
    %200 = arith.index_cast %199 : i32 to index
    %c0_82 = arith.constant 0 : index
    %201 = vector.load %arg2[%200, %c0_82] : memref<64x128xf32, #tpu.memory_space<vmem>>, vector<1x32xf32>
    %202 = arith.index_cast %c6_i32 : i32 to index
    %c64_83 = arith.constant 64 : index
    %203 = vector.load %arg3[%202, %c64_83] : memref<8x128xf32, #tpu.memory_space<vmem>>, vector<1x32xf32>
    tpu.vector_store %arg3[%202, %c64_83], %201 {strides = array<i32>} : memref<8x128xf32, #tpu.memory_space<vmem>>, vector<1x32xf32>,
    %c3_i32_84 = arith.constant 3 : i32
    %204 = arith.addi %182, %c3_i32_84 : i32
    %205 = arith.index_cast %204 : i32 to index
    %206 = memref.load %arg1[%205] : memref<32xi32, #tpu.memory_space<smem>>
    %207 = arith.index_cast %206 : i32 to index
    %c0_85 = arith.constant 0 : index
    %208 = vector.load %arg2[%207, %c0_85] : memref<64x128xf32, #tpu.memory_space<vmem>>, vector<1x32xf32>
    %209 = arith.index_cast %c6_i32 : i32 to index
    %c96_86 = arith.constant 96 : index
    %210 = vector.load %arg3[%209, %c96_86] : memref<8x128xf32, #tpu.memory_space<vmem>>, vector<1x32xf32>
    tpu.vector_store %arg3[%209, %c96_86], %208 {strides = array<i32>} : memref<8x128xf32, #tpu.memory_space<vmem>>, vector<1x32xf32>,
    %c7_i32 = arith.constant 7 : i32
    %c4_i32_87 = arith.constant 4 : i32
    %211 = arith.muli %c7_i32, %c4_i32_87 : i32
    %212 = arith.addi %0, %211 : i32
    %c0_i32_88 = arith.constant 0 : i32
    %213 = arith.addi %212, %c0_i32_88 : i32
    %214 = arith.index_cast %213 : i32 to index
    %215 = memref.load %arg1[%214] : memref<32xi32, #tpu.memory_space<smem>>
    %216 = arith.index_cast %215 : i32 to index
    %c0_89 = arith.constant 0 : index
    %217 = vector.load %arg2[%216, %c0_89] : memref<64x128xf32, #tpu.memory_space<vmem>>, vector<1x32xf32>
    %218 = arith.index_cast %c7_i32 : i32 to index
    %c0_90 = arith.constant 0 : index
    %219 = vector.load %arg3[%218, %c0_90] : memref<8x128xf32, #tpu.memory_space<vmem>>, vector<1x32xf32>
    tpu.vector_store %arg3[%218, %c0_90], %217 {strides = array<i32>} : memref<8x128xf32, #tpu.memory_space<vmem>>, vector<1x32xf32>,
    %c1_i32_91 = arith.constant 1 : i32
    %220 = arith.addi %212, %c1_i32_91 : i32
    %221 = arith.index_cast %220 : i32 to index
    %222 = memref.load %arg1[%221] : memref<32xi32, #tpu.memory_space<smem>>
    %223 = arith.index_cast %222 : i32 to index
    %c0_92 = arith.constant 0 : index
    %224 = vector.load %arg2[%223, %c0_92] : memref<64x128xf32, #tpu.memory_space<vmem>>, vector<1x32xf32>
    %225 = arith.index_cast %c7_i32 : i32 to index
    %c32_93 = arith.constant 32 : index
    %226 = vector.load %arg3[%225, %c32_93] : memref<8x128xf32, #tpu.memory_space<vmem>>, vector<1x32xf32>
    tpu.vector_store %arg3[%225, %c32_93], %224 {strides = array<i32>} : memref<8x128xf32, #tpu.memory_space<vmem>>, vector<1x32xf32>,
    %c2_i32_94 = arith.constant 2 : i32
    %227 = arith.addi %212, %c2_i32_94 : i32
    %228 = arith.index_cast %227 : i32 to index
    %229 = memref.load %arg1[%228] : memref<32xi32, #tpu.memory_space<smem>>
    %230 = arith.index_cast %229 : i32 to index
    %c0_95 = arith.constant 0 : index
    %231 = vector.load %arg2[%230, %c0_95] : memref<64x128xf32, #tpu.memory_space<vmem>>, vector<1x32xf32>
    %232 = arith.index_cast %c7_i32 : i32 to index
    %c64_96 = arith.constant 64 : index
    %233 = vector.load %arg3[%232, %c64_96] : memref<8x128xf32, #tpu.memory_space<vmem>>, vector<1x32xf32>
    tpu.vector_store %arg3[%232, %c64_96], %231 {strides = array<i32>} : memref<8x128xf32, #tpu.memory_space<vmem>>, vector<1x32xf32>,
    %c3_i32_97 = arith.constant 3 : i32
    %234 = arith.addi %212, %c3_i32_97 : i32
    %235 = arith.index_cast %234 : i32 to index
    %236 = memref.load %arg1[%235] : memref<32xi32, #tpu.memory_space<smem>>
    %237 = arith.index_cast %236 : i32 to index
    %c0_98 = arith.constant 0 : index
    %238 = vector.load %arg2[%237, %c0_98] : memref<64x128xf32, #tpu.memory_space<vmem>>, vector<1x32xf32>
    %239 = arith.index_cast %c7_i32 : i32 to index
    %c96_99 = arith.constant 96 : index
    %240 = vector.load %arg3[%239, %c96_99] : memref<8x128xf32, #tpu.memory_space<vmem>>, vector<1x32xf32>
    tpu.vector_store %arg3[%239, %c96_99], %238 {strides = array<i32>} : memref<8x128xf32, #tpu.memory_space<vmem>>, vector<1x32xf32>,
    %c8_i32 = arith.constant 8 : i32
    return
  }
  func.func @transform_0(%arg0: i32, %arg1: memref<32xi32, #tpu.memory_space<smem>>) -> (i32, i32) {
    %c0_i32 = arith.constant 0 : i32
    %c0_i32_0 = arith.constant 0 : i32
    %c0_i32_1 = arith.constant 0 : i32
    return %c0_i32, %c0_i32_0 : i32, i32
  }
  func.func @transform_1(%arg0: i32, %arg1: memref<32xi32, #tpu.memory_space<smem>>) -> (i32, i32) {
    %c0_i32 = arith.constant 0 : i32
    %c0_i32_0 = arith.constant 0 : i32
    return %arg0, %c0_i32 : i32, i32
  }
}

</mosaic_0001>

<llo_original>
// kernel: tpu_custom_call.1
$region0: #{tpu_custom_call.1}
  #allocation0 [shape = 'u32[]', space=smem, size = 0x4, offset = 0x4, fixed_abs, tag = 'smem constant byte address 0x4 - core index']
  #allocation1 [shape = 'u32[144,128]{1,0:T(1,128)}', space=vmem, size = 0x12000, scoped, tag = 'internal scratch']
  #allocation2 [shape = 's32[1]{0}', space=sflag, size = 0x4, scoped, tag = 'scoped memory for tpu_custom_call.1']
  #allocation3 [shape = 'u8[512]{0}', space=smem, size = 0x200, scoped, tag = 'prefetched SMEM operand 0']
  %s0 = inlined_call_operand.hbm [shape: s32[32], index: 0, kind: input, shape index: {}]
  %s1 = inlined_call_operand.hbm [shape: f32[64,128], index: 1, kind: input, shape index: {}]
  %s2 = inlined_call_operand.hbm [shape: f32[8,128], index: 2, kind: output, shape index: {}]
  %s3 = sld [smem:[#allocation0]]
  $region18: #{tpu_custom_call.1} parent=0
    _
  %s5 = ssub.s32 1, %s3
  %s6 = scalar_select 0, %s5, %s3
  %8 = dma.hbm_to_smem %s0, 16, [#allocation3], [#allocation2]
  %9 = dma.done [#allocation2], 16
  %10 = sfence
  $region1: #{tpu_custom_call.1} parent=0
    #allocation4 [shape = 'u8[32768]{0}', space=vmem, size = 0x8000, scoped, tag = 'input window, operand 1, single buffered']
    #allocation5 [shape = 's32[1]{0}', space=sflag, size = 0x4, scoped, tag = 'scoped memory for tpu_custom_call.1']
    #allocation6 [shape = 's32[1]{0}', space=sflag, size = 0x4, scoped, tag = 'scoped memory for tpu_custom_call.1']
    #allocation7 [shape = 'u8[4096]{0}', space=vmem, size = 0x1000, scoped, tag = 'output window, operand 0, single buffered']
    %11 = vsyncpa [#allocation5], 0
    %12 = vsyncpa [#allocation6], 0
    // Predicated region
    $region2: #{tpu_custom_call.1} parent=1 // pred_check
      _
    $region3: #{tpu_custom_call.1} parent=1 // pred_check_branch
      %14 = sbr.rel (0) target = $region5
    $region4: #{tpu_custom_call.1} parent=1 // pred_region
      %s16 = ssub.s32 1024, 1024
      %17 = vsyncadd [#allocation5], %s16
      %s18 = sshll.u32 [#allocation4], 4
      %s19 = int_to_ptr.vmem [resolvable:$true] %s18
      %24 = dma.hbm_to_vmem [thread:$0]  %s1, 1024, %s19, [#allocation5], 128, 128, 8
    $region5: #{tpu_custom_call.1} parent=1 // pred_fallthru
      _
    // Predicated region
    $region6: #{tpu_custom_call.1} parent=1 // pred_check
      _
    $region7: #{tpu_custom_call.1} parent=1 // pred_check_branch
      %26 = sbr.rel (0) target = $region9
    $region8: #{tpu_custom_call.1} parent=1 // pred_region
      %27 = dma.done [#allocation5], 1024
    $region9: #{tpu_custom_call.1} parent=1 // pred_fallthru
      _
    %s28 = smul.u32 0, 32
    %s29 = sld [smem:[#allocation3 + %s28]]
    %s30 = scalar_lea.vmem [#allocation4], %s29
    %v31 = vld [vmem:[%s30] sm:$0x1]
    %vm32 = vcmask 253952
    %33 = vst.msk [vmem:[#allocation7] sm:$0x1] %vm32, %v31
    %s34 = sadd.s32 %s28, 1
    %s35 = sld [smem:[#allocation3 + %s34]]
    %s36 = scalar_lea.vmem [#allocation4], %s35
    %v37 = vld [vmem:[%s36] sm:$0x1]
    %39 = vrot.lane.b32.xlu0 %v37, 32
    %v40 = vpop.permute.xlu0 %39
    %vm42 = vcmask 516352
    %43 = vst.msk [vmem:[#allocation7] sm:$0x1] %vm42, %v40
    %s44 = sadd.s32 %s28, 2
    %s45 = sld [smem:[#allocation3 + %s44]]
    %s46 = scalar_lea.vmem [#allocation4], %s45
    %v47 = vld [vmem:[%s46] sm:$0x1]
    %49 = vrot.lane.b32.xlu0 %v47, 64
    %v50 = vpop.permute.xlu0 %49
    %vm52 = vcmask 778752
    %53 = vst.msk [vmem:[#allocation7] sm:$0x1] %vm52, %v50
    %s54 = sadd.s32 %s28, 3
    %s55 = sld [smem:[#allocation3 + %s54]]
    %s56 = scalar_lea.vmem [#allocation4], %s55
    %v57 = vld [vmem:[%s56] sm:$0x1]
    %59 = vrot.lane.b32.xlu0 %v57, 96
    %v60 = vpop.permute.xlu0 %59
    %vm62 = vcmask 1041152
    %63 = vst.msk [vmem:[#allocation7] sm:$0x1] %vm62, %v60
    %s64 = sadd.s32 %s28, 4
    %s65 = sld [smem:[#allocation3 + %s64]]
    %s66 = scalar_lea.vmem [#allocation4], %s65
    %v67 = vld [vmem:[%s66] sm:$0x1]
    %68 = vst.msk [vmem:[#allocation7 + $0x1] sm:$0x1] %vm32, %v67
    %s69 = sadd.s32 %s28, 5
    %s70 = sld [smem:[#allocation3 + %s69]]
    %s71 = scalar_lea.vmem [#allocation4], %s70
    %v72 = vld [vmem:[%s71] sm:$0x1]
    %74 = vrot.lane.b32.xlu0 %v72, 32
    %v75 = vpop.permute.xlu0 %74
    %77 = vst.msk [vmem:[#allocation7 + $0x1] sm:$0x1] %vm42, %v75
    %s78 = sadd.s32 %s28, 6
    %s79 = sld [smem:[#allocation3 + %s78]]
    %s80 = scalar_lea.vmem [#allocation4], %s79
    %v81 = vld [vmem:[%s80] sm:$0x1]
    %83 = vrot.lane.b32.xlu0 %v81, 64
    %v84 = vpop.permute.xlu0 %83
    %86 = vst.msk [vmem:[#allocation7 + $0x1] sm:$0x1] %vm52, %v84
    %s87 = sadd.s32 %s28, 7
    %s88 = sld [smem:[#allocation3 + %s87]]
    %s89 = scalar_lea.vmem [#allocation4], %s88
    %v90 = vld [vmem:[%s89] sm:$0x1]
    %92 = vrot.lane.b32.xlu0 %v90, 96
    %v93 = vpop.permute.xlu0 %92
    %95 = vst.msk [vmem:[#allocation7 + $0x1] sm:$0x1] %vm62, %v93
    %s96 = sadd.s32 %s28, 8
    %s97 = sld [smem:[#allocation3 + %s96]]
    %s98 = scalar_lea.vmem [#allocation4], %s97
    %v99 = vld [vmem:[%s98] sm:$0x1]
    %100 = vst.msk [vmem:[#allocation7 + $0x2] sm:$0x1] %vm32, %v99
    %s101 = sadd.s32 %s28, 9
    %s102 = sld [smem:[#allocation3 + %s101]]
    %s103 = scalar_lea.vmem [#allocation4], %s102
    %v104 = vld [vmem:[%s103] sm:$0x1]
    %106 = vrot.lane.b32.xlu0 %v104, 32
    %v107 = vpop.permute.xlu0 %106
    %109 = vst.msk [vmem:[#allocation7 + $0x2] sm:$0x1] %vm42, %v107
    %s110 = sadd.s32 %s28, 10
    %s111 = sld [smem:[#allocation3 + %s110]]
    %s112 = scalar_lea.vmem [#allocation4], %s111
    %v113 = vld [vmem:[%s112] sm:$0x1]
    %115 = vrot.lane.b32.xlu0 %v113, 64
    %v116 = vpop.permute.xlu0 %115
    %118 = vst.msk [vmem:[#allocation7 + $0x2] sm:$0x1] %vm52, %v116
    %s119 = sadd.s32 %s28, 11
    %s120 = sld [smem:[#allocation3 + %s119]]
    %s121 = scalar_lea.vmem [#allocation4], %s120
    %v122 = vld [vmem:[%s121] sm:$0x1]
    %124 = vrot.lane.b32.xlu0 %v122, 96
    %v125 = vpop.permute.xlu0 %124
    %127 = vst.msk [vmem:[#allocation7 + $0x2] sm:$0x1] %vm62, %v125
    %s128 = sadd.s32 %s28, 12
    %s129 = sld [smem:[#allocation3 + %s128]]
    %s130 = scalar_lea.vmem [#allocation4], %s129
    %v131 = vld [vmem:[%s130] sm:$0x1]
    %132 = vst.msk [vmem:[#allocation7 + $0x3] sm:$0x1] %vm32, %v131
    %s133 = sadd.s32 %s28, 13
    %s134 = sld [smem:[#allocation3 + %s133]]
    %s135 = scalar_lea.vmem [#allocation4], %s134
    %v136 = vld [vmem:[%s135] sm:$0x1]
    %138 = vrot.lane.b32.xlu0 %v136, 32
    %v139 = vpop.permute.xlu0 %138
    %141 = vst.msk [vmem:[#allocation7 + $0x3] sm:$0x1] %vm42, %v139
    %s142 = sadd.s32 %s28, 14
    %s143 = sld [smem:[#allocation3 + %s142]]
    %s144 = scalar_lea.vmem [#allocation4], %s143
    %v145 = vld [vmem:[%s144] sm:$0x1]
    %147 = vrot.lane.b32.xlu0 %v145, 64
    %v148 = vpop.permute.xlu0 %147
    %150 = vst.msk [vmem:[#allocation7 + $0x3] sm:$0x1] %vm52, %v148
    %s151 = sadd.s32 %s28, 15
    %s152 = sld [smem:[#allocation3 + %s151]]
    %s153 = scalar_lea.vmem [#allocation4], %s152
    %v154 = vld [vmem:[%s153] sm:$0x1]
    %156 = vrot.lane.b32.xlu0 %v154, 96
    %v157 = vpop.permute.xlu0 %156
    %159 = vst.msk [vmem:[#allocation7 + $0x3] sm:$0x1] %vm62, %v157
    %s160 = sadd.s32 %s28, 16
    %s161 = sld [smem:[#allocation3 + %s160]]
    %s162 = scalar_lea.vmem [#allocation4], %s161
    %v163 = vld [vmem:[%s162] sm:$0x1]
    %164 = vst.msk [vmem:[#allocation7 + $0x4] sm:$0x1] %vm32, %v163
    %s165 = sadd.s32 %s28, 17
    %s166 = sld [smem:[#allocation3 + %s165]]
    %s167 = scalar_lea.vmem [#allocation4], %s166
    %v168 = vld [vmem:[%s167] sm:$0x1]
    %170 = vrot.lane.b32.xlu0 %v168, 32
    %v171 = vpop.permute.xlu0 %170
    %173 = vst.msk [vmem:[#allocation7 + $0x4] sm:$0x1] %vm42, %v171
    %s174 = sadd.s32 %s28, 18
    %s175 = sld [smem:[#allocation3 + %s174]]
    %s176 = scalar_lea.vmem [#allocation4], %s175
    %v177 = vld [vmem:[%s176] sm:$0x1]
    %179 = vrot.lane.b32.xlu0 %v177, 64
    %v180 = vpop.permute.xlu0 %179
    %182 = vst.msk [vmem:[#allocation7 + $0x4] sm:$0x1] %vm52, %v180
    %s183 = sadd.s32 %s28, 19
    %s184 = sld [smem:[#allocation3 + %s183]]
    %s185 = scalar_lea.vmem [#allocation4], %s184
    %v186 = vld [vmem:[%s185] sm:$0x1]
    %188 = vrot.lane.b32.xlu0 %v186, 96
    %v189 = vpop.permute.xlu0 %188
    %191 = vst.msk [vmem:[#allocation7 + $0x4] sm:$0x1] %vm62, %v189
    %s192 = sadd.s32 %s28, 20
    %s193 = sld [smem:[#allocation3 + %s192]]
    %s194 = scalar_lea.vmem [#allocation4], %s193
    %v195 = vld [vmem:[%s194] sm:$0x1]
    %196 = vst.msk [vmem:[#allocation7 + $0x5] sm:$0x1] %vm32, %v195
    %s197 = sadd.s32 %s28, 21
    %s198 = sld [smem:[#allocation3 + %s197]]
    %s199 = scalar_lea.vmem [#allocation4], %s198
    %v200 = vld [vmem:[%s199] sm:$0x1]
    %202 = vrot.lane.b32.xlu0 %v200, 32
    %v203 = vpop.permute.xlu0 %202
    %205 = vst.msk [vmem:[#allocation7 + $0x5] sm:$0x1] %vm42, %v203
    %s206 = sadd.s32 %s28, 22
    %s207 = sld [smem:[#allocation3 + %s206]]
    %s208 = scalar_lea.vmem [#allocation4], %s207
    %v209 = vld [vmem:[%s208] sm:$0x1]
    %211 = vrot.lane.b32.xlu0 %v209, 64
    %v212 = vpop.permute.xlu0 %211
    %214 = vst.msk [vmem:[#allocation7 + $0x5] sm:$0x1] %vm52, %v212
    %s215 = sadd.s32 %s28, 23
    %s216 = sld [smem:[#allocation3 + %s215]]
    %s217 = scalar_lea.vmem [#allocation4], %s216
    %v218 = vld [vmem:[%s217] sm:$0x1]
    %220 = vrot.lane.b32.xlu0 %v218, 96
    %v221 = vpop.permute.xlu0 %220
    %223 = vst.msk [vmem:[#allocation7 + $0x5] sm:$0x1] %vm62, %v221
    %s224 = sadd.s32 %s28, 24
    %s225 = sld [smem:[#allocation3 + %s224]]
    %s226 = scalar_lea.vmem [#allocation4], %s225
    %v227 = vld [vmem:[%s226] sm:$0x1]
    %228 = vst.msk [vmem:[#allocation7 + $0x6] sm:$0x1] %vm32, %v227
    %s229 = sadd.s32 %s28, 25
    %s230 = sld [smem:[#allocation3 + %s229]]
    %s231 = scalar_lea.vmem [#allocation4], %s230
    %v232 = vld [vmem:[%s231] sm:$0x1]
    %234 = vrot.lane.b32.xlu0 %v232, 32
    %v235 = vpop.permute.xlu0 %234
    %237 = vst.msk [vmem:[#allocation7 + $0x6] sm:$0x1] %vm42, %v235
    %s238 = sadd.s32 %s28, 26
    %s239 = sld [smem:[#allocation3 + %s238]]
    %s240 = scalar_lea.vmem [#allocation4], %s239
    %v241 = vld [vmem:[%s240] sm:$0x1]
    %243 = vrot.lane.b32.xlu0 %v241, 64
    %v244 = vpop.permute.xlu0 %243
    %246 = vst.msk [vmem:[#allocation7 + $0x6] sm:$0x1] %vm52, %v244
    %s247 = sadd.s32 %s28, 27
    %s248 = sld [smem:[#allocation3 + %s247]]
    %s249 = scalar_lea.vmem [#allocation4], %s248
    %v250 = vld [vmem:[%s249] sm:$0x1]
    %252 = vrot.lane.b32.xlu0 %v250, 96
    %v253 = vpop.permute.xlu0 %252
    %255 = vst.msk [vmem:[#allocation7 + $0x6] sm:$0x1] %vm62, %v253
    %s256 = sadd.s32 %s28, 28
    %s257 = sld [smem:[#allocation3 + %s256]]
    %s258 = scalar_lea.vmem [#allocation4], %s257
    %v259 = vld [vmem:[%s258] sm:$0x1]
    %260 = vst.msk [vmem:[#allocation7 + $0x7] sm:$0x1] %vm32, %v259
    %s261 = sadd.s32 %s28, 29
    %s262 = sld [smem:[#allocation3 + %s261]]
    %s263 = scalar_lea.vmem [#allocation4], %s262
    %v264 = vld [vmem:[%s263] sm:$0x1]
    %266 = vrot.lane.b32.xlu0 %v264, 32
    %v267 = vpop.permute.xlu0 %266
    %269 = vst.msk [vmem:[#allocation7 + $0x7] sm:$0x1] %vm42, %v267
    %s270 = sadd.s32 %s28, 30
    %s271 = sld [smem:[#allocation3 + %s270]]
    %s272 = scalar_lea.vmem [#allocation4], %s271
    %v273 = vld [vmem:[%s272] sm:$0x1]
    %275 = vrot.lane.b32.xlu0 %v273, 64
    %v276 = vpop.permute.xlu0 %275
    %278 = vst.msk [vmem:[#allocation7 + $0x7] sm:$0x1] %vm52, %v276
    %s279 = sadd.s32 %s28, 31
    %s280 = sld [smem:[#allocation3 + %s279]]
    %s281 = scalar_lea.vmem [#allocation4], %s280
    %v282 = vld [vmem:[%s281] sm:$0x1]
    %284 = vrot.lane.b32.xlu0 %v282, 96
    %v285 = vpop.permute.xlu0 %284
    %287 = vst.msk [vmem:[#allocation7 + $0x7] sm:$0x1] %vm62, %v285
    // Predicated region
    $region10: #{tpu_custom_call.1} parent=1 // pred_check
      _
    $region11: #{tpu_custom_call.1} parent=1 // pred_check_branch
      %289 = sbr.rel (0) target = $region13
    $region12: #{tpu_custom_call.1} parent=1 // pred_region
      %s291 = ssub.s32 128, 128
      %292 = vsyncadd [#allocation6], %s291
      %s294 = sshll.u32 [#allocation7], 4
      %s295 = int_to_ptr.vmem [resolvable:$true] %s294
      %297 = dma.vmem_to_hbm [thread:$0]  %s295, 128, %s2, [#allocation6]
    $region13: #{tpu_custom_call.1} parent=1 // pred_fallthru
      _
    // Predicated region
    $region14: #{tpu_custom_call.1} parent=1 // pred_check
      _
    $region15: #{tpu_custom_call.1} parent=1 // pred_check_branch
      %299 = sbr.rel (0) target = $region17
    $region16: #{tpu_custom_call.1} parent=1 // pred_region
      %300 = dma.done [#allocation6], 128
    $region17: #{tpu_custom_call.1} parent=1 // pred_fallthru
      _
    %301 = vsyncpa [#allocation5], 1
    %302 = vsyncpa [#allocation6], 1

// kernel: tpu_custom_call.1
$region0: #{tpu_custom_call.1}
  #allocation0 [shape = 'u32[]', space=smem, size = 0x4, offset = 0x4, fixed_abs, tag = 'smem constant byte address 0x4 - core index']
  #allocation1 [shape = 'u32[144,128]{1,0:T(1,128)}', space=vmem, size = 0x12000, scoped, tag = 'internal scratch']
  #allocation2 [shape = 's32[1]{0}', space=sflag, size = 0x4, scoped, tag = 'scoped memory for tpu_custom_call.1']
  #allocation3 [shape = 'u8[512]{0}', space=smem, size = 0x200, scoped, tag = 'prefetched SMEM operand 0']
  %s0 = inlined_call_operand.hbm [shape: s32[32], index: 0, kind: input, shape index: {}]
  %s1 = inlined_call_operand.hbm [shape: f32[64,128], index: 1, kind: input, shape index: {}]
  %s2 = inlined_call_operand.hbm [shape: f32[8,128], index: 2, kind: output, shape index: {}]
  %s3 = sld [smem:[#allocation0]]
  $region18: #{tpu_custom_call.1} parent=0
    _
  %s5 = ssub.s32 1, %s3
  %s6 = scalar_select 0, %s5, %s3
  %8 = dma.hbm_to_smem %s0, 16, [#allocation3], [#allocation2]
  %9 = dma.done [#allocation2], 16
  %10 = sfence
  $region1: #{tpu_custom_call.1} parent=0
    #allocation4 [shape = 'u8[32768]{0}', space=vmem, size = 0x8000, scoped, tag = 'input window, operand 1, single buffered']
    #allocation5 [shape = 's32[1]{0}', space=sflag, size = 0x4, scoped, tag = 'scoped memory for tpu_custom_call.1']
    #allocation6 [shape = 's32[1]{0}', space=sflag, size = 0x4, scoped, tag = 'scoped memory for tpu_custom_call.1']
    #allocation7 [shape = 'u8[4096]{0}', space=vmem, size = 0x1000, scoped, tag = 'output window, operand 0, single buffered']
    %11 = vsyncpa [#allocation5], 0
    %12 = vsyncpa [#allocation6], 0
    // Predicated region
    $region2: #{tpu_custom_call.1} parent=1 // pred_check
      _
    $region3: #{tpu_custom_call.1} parent=1 // pred_check_branch
      %14 = sbr.rel (0) target = $region5
    $region4: #{tpu_custom_call.1} parent=1 // pred_region
      %s16 = ssub.s32 1024, 1024
      %17 = vsyncadd [#allocation5], %s16
      %s18 = sshll.u32 [#allocation4], 4
      %s19 = int_to_ptr.vmem [resolvable:$true] %s18
      %24 = dma.hbm_to_vmem [thread:$0]  %s1, 1024, %s19, [#allocation5], 128, 128, 8
    $region5: #{tpu_custom_call.1} parent=1 // pred_fallthru
      _
    // Predicated region
    $region6: #{tpu_custom_call.1} parent=1 // pred_check
      _
    $region7: #{tpu_custom_call.1} parent=1 // pred_check_branch
      %26 = sbr.rel (0) target = $region9
    $region8: #{tpu_custom_call.1} parent=1 // pred_region
      %27 = dma.done [#allocation5], 1024
    $region9: #{tpu_custom_call.1} parent=1 // pred_fallthru
      _
    %s28 = smul.u32 0, 32
    %s29 = sld [smem:[#allocation3 + %s28]]
    %s30 = scalar_lea.vmem [#allocation4], %s29
    %v31 = vld [vmem:[%s30] sm:$0x1]
    %vm32 = vcmask 253952
    %33 = vst.msk [vmem:[#allocation7] sm:$0x1] %vm32, %v31
    %s34 = sadd.s32 %s28, 1
    %s35 = sld [smem:[#allocation3 + %s34]]
    %s36 = scalar_lea.vmem [#allocation4], %s35
    %v37 = vld [vmem:[%s36] sm:$0x1]
    %39 = vrot.lane.b32.xlu0 %v37, 32
    %v40 = vpop.permute.xlu0 %39
    %vm42 = vcmask 516352
    %43 = vst.msk [vmem:[#allocation7] sm:$0x1] %vm42, %v40
    %s44 = sadd.s32 %s28, 2
    %s45 = sld [smem:[#allocation3 + %s44]]
    %s46 = scalar_lea.vmem [#allocation4], %s45
    %v47 = vld [vmem:[%s46] sm:$0x1]
    %49 = vrot.lane.b32.xlu0 %v47, 64
    %v50 = vpop.permute.xlu0 %49
    %vm52 = vcmask 778752
    %53 = vst.msk [vmem:[#allocation7] sm:$0x1] %vm52, %v50
    %s54 = sadd.s32 %s28, 3
    %s55 = sld [smem:[#allocation3 + %s54]]
    %s56 = scalar_lea.vmem [#allocation4], %s55
    %v57 = vld [vmem:[%s56] sm:$0x1]
    %59 = vrot.lane.b32.xlu0 %v57, 96
    %v60 = vpop.permute.xlu0 %59
    %vm62 = vcmask 1041152
    %63 = vst.msk [vmem:[#allocation7] sm:$0x1] %vm62, %v60
    %s64 = sadd.s32 %s28, 4
    %s65 = sld [smem:[#allocation3 + %s64]]
    %s66 = scalar_lea.vmem [#allocation4], %s65
    %v67 = vld [vmem:[%s66] sm:$0x1]
    %68 = vst.msk [vmem:[#allocation7 + $0x1] sm:$0x1] %vm32, %v67
    %s69 = sadd.s32 %s28, 5
    %s70 = sld [smem:[#allocation3 + %s69]]
    %s71 = scalar_lea.vmem [#allocation4], %s70
    %v72 = vld [vmem:[%s71] sm:$0x1]
    %74 = vrot.lane.b32.xlu0 %v72, 32
    %v75 = vpop.permute.xlu0 %74
    %77 = vst.msk [vmem:[#allocation7 + $0x1] sm:$0x1] %vm42, %v75
    %s78 = sadd.s32 %s28, 6
    %s79 = sld [smem:[#allocation3 + %s78]]
    %s80 = scalar_lea.vmem [#allocation4], %s79
    %v81 = vld [vmem:[%s80] sm:$0x1]
    %83 = vrot.lane.b32.xlu0 %v81, 64
    %v84 = vpop.permute.xlu0 %83
    %86 = vst.msk [vmem:[#allocation7 + $0x1] sm:$0x1] %vm52, %v84
    %s87 = sadd.s32 %s28, 7
    %s88 = sld [smem:[#allocation3 + %s87]]
    %s89 = scalar_lea.vmem [#allocation4], %s88
    %v90 = vld [vmem:[%s89] sm:$0x1]
    %92 = vrot.lane.b32.xlu0 %v90, 96
    %v93 = vpop.permute.xlu0 %92
    %95 = vst.msk [vmem:[#allocation7 + $0x1] sm:$0x1] %vm62, %v93
    %s96 = sadd.s32 %s28, 8
    %s97 = sld [smem:[#allocation3 + %s96]]
    %s98 = scalar_lea.vmem [#allocation4], %s97
    %v99 = vld [vmem:[%s98] sm:$0x1]
    %100 = vst.msk [vmem:[#allocation7 + $0x2] sm:$0x1] %vm32, %v99
    %s101 = sadd.s32 %s28, 9
    %s102 = sld [smem:[#allocation3 + %s101]]
    %s103 = scalar_lea.vmem [#allocation4], %s102
    %v104 = vld [vmem:[%s103] sm:$0x1]
    %106 = vrot.lane.b32.xlu0 %v104, 32
    %v107 = vpop.permute.xlu0 %106
    %109 = vst.msk [vmem:[#allocation7 + $0x2] sm:$0x1] %vm42, %v107
    %s110 = sadd.s32 %s28, 10
    %s111 = sld [smem:[#allocation3 + %s110]]
    %s112 = scalar_lea.vmem [#allocation4], %s111
    %v113 = vld [vmem:[%s112] sm:$0x1]
    %115 = vrot.lane.b32.xlu0 %v113, 64
    %v116 = vpop.permute.xlu0 %115
    %118 = vst.msk [vmem:[#allocation7 + $0x2] sm:$0x1] %vm52, %v116
    %s119 = sadd.s32 %s28, 11
    %s120 = sld [smem:[#allocation3 + %s119]]
    %s121 = scalar_lea.vmem [#allocation4], %s120
    %v122 = vld [vmem:[%s121] sm:$0x1]
    %124 = vrot.lane.b32.xlu0 %v122, 96
    %v125 = vpop.permute.xlu0 %124
    %127 = vst.msk [vmem:[#allocation7 + $0x2] sm:$0x1] %vm62, %v125
    %s128 = sadd.s32 %s28, 12
    %s129 = sld [smem:[#allocation3 + %s128]]
    %s130 = scalar_lea.vmem [#allocation4], %s129
    %v131 = vld [vmem:[%s130] sm:$0x1]
    %132 = vst.msk [vmem:[#allocation7 + $0x3] sm:$0x1] %vm32, %v131
    %s133 = sadd.s32 %s28, 13
    %s134 = sld [smem:[#allocation3 + %s133]]
    %s135 = scalar_lea.vmem [#allocation4], %s134
    %v136 = vld [vmem:[%s135] sm:$0x1]
    %138 = vrot.lane.b32.xlu0 %v136, 32
    %v139 = vpop.permute.xlu0 %138
    %141 = vst.msk [vmem:[#allocation7 + $0x3] sm:$0x1] %vm42, %v139
    %s142 = sadd.s32 %s28, 14
    %s143 = sld [smem:[#allocation3 + %s142]]
    %s144 = scalar_lea.vmem [#allocation4], %s143
    %v145 = vld [vmem:[%s144] sm:$0x1]
    %147 = vrot.lane.b32.xlu0 %v145, 64
    %v148 = vpop.permute.xlu0 %147
    %150 = vst.msk [vmem:[#allocation7 + $0x3] sm:$0x1] %vm52, %v148
    %s151 = sadd.s32 %s28, 15
    %s152 = sld [smem:[#allocation3 + %s151]]
    %s153 = scalar_lea.vmem [#allocation4], %s152
    %v154 = vld [vmem:[%s153] sm:$0x1]
    %156 = vrot.lane.b32.xlu0 %v154, 96
    %v157 = vpop.permute.xlu0 %156
    %159 = vst.msk [vmem:[#allocation7 + $0x3] sm:$0x1] %vm62, %v157
    %s160 = sadd.s32 %s28, 16
    %s161 = sld [smem:[#allocation3 + %s160]]
    %s162 = scalar_lea.vmem [#allocation4], %s161
    %v163 = vld [vmem:[%s162] sm:$0x1]
    %164 = vst.msk [vmem:[#allocation7 + $0x4] sm:$0x1] %vm32, %v163
    %s165 = sadd.s32 %s28, 17
    %s166 = sld [smem:[#allocation3 + %s165]]
    %s167 = scalar_lea.vmem [#allocation4], %s166
    %v168 = vld [vmem:[%s167] sm:$0x1]
    %170 = vrot.lane.b32.xlu0 %v168, 32
    %v171 = vpop.permute.xlu0 %170
    %173 = vst.msk [vmem:[#allocation7 + $0x4] sm:$0x1] %vm42, %v171
    %s174 = sadd.s32 %s28, 18
    %s175 = sld [smem:[#allocation3 + %s174]]
    %s176 = scalar_lea.vmem [#allocation4], %s175
    %v177 = vld [vmem:[%s176] sm:$0x1]
    %179 = vrot.lane.b32.xlu0 %v177, 64
    %v180 = vpop.permute.xlu0 %179
    %182 = vst.msk [vmem:[#allocation7 + $0x4] sm:$0x1] %vm52, %v180
    %s183 = sadd.s32 %s28, 19
    %s184 = sld [smem:[#allocation3 + %s183]]
    %s185 = scalar_lea.vmem [#allocation4], %s184
    %v186 = vld [vmem:[%s185] sm:$0x1]
    %188 = vrot.lane.b32.xlu0 %v186, 96
    %v189 = vpop.permute.xlu0 %188
    %191 = vst.msk [vmem:[#allocation7 + $0x4] sm:$0x1] %vm62, %v189
    %s192 = sadd.s32 %s28, 20
    %s193 = sld [smem:[#allocation3 + %s192]]
    %s194 = scalar_lea.vmem [#allocation4], %s193
    %v195 = vld [vmem:[%s194] sm:$0x1]
    %196 = vst.msk [vmem:[#allocation7 + $0x5] sm:$0x1] %vm32, %v195
    %s197 = sadd.s32 %s28, 21
    %s198 = sld [smem:[#allocation3 + %s197]]
    %s199 = scalar_lea.vmem [#allocation4], %s198
    %v200 = vld [vmem:[%s199] sm:$0x1]
    %202 = vrot.lane.b32.xlu0 %v200, 32
    %v203 = vpop.permute.xlu0 %202
    %205 = vst.msk [vmem:[#allocation7 + $0x5] sm:$0x1] %vm42, %v203
    %s206 = sadd.s32 %s28, 22
    %s207 = sld [smem:[#allocation3 + %s206]]
    %s208 = scalar_lea.vmem [#allocation4], %s207
    %v209 = vld [vmem:[%s208] sm:$0x1]
    %211 = vrot.lane.b32.xlu0 %v209, 64
    %v212 = vpop.permute.xlu0 %211
    %214 = vst.msk [vmem:[#allocation7 + $0x5] sm:$0x1] %vm52, %v212
    %s215 = sadd.s32 %s28, 23
    %s216 = sld [smem:[#allocation3 + %s215]]
    %s217 = scalar_lea.vmem [#allocation4], %s216
    %v218 = vld [vmem:[%s217] sm:$0x1]
    %220 = vrot.lane.b32.xlu0 %v218, 96
    %v221 = vpop.permute.xlu0 %220
    %223 = vst.msk [vmem:[#allocation7 + $0x5] sm:$0x1] %vm62, %v221
    %s224 = sadd.s32 %s28, 24
    %s225 = sld [smem:[#allocation3 + %s224]]
    %s226 = scalar_lea.vmem [#allocation4], %s225
    %v227 = vld [vmem:[%s226] sm:$0x1]
    %228 = vst.msk [vmem:[#allocation7 + $0x6] sm:$0x1] %vm32, %v227
    %s229 = sadd.s32 %s28, 25
    %s230 = sld [smem:[#allocation3 + %s229]]
    %s231 = scalar_lea.vmem [#allocation4], %s230
    %v232 = vld [vmem:[%s231] sm:$0x1]
    %234 = vrot.lane.b32.xlu0 %v232, 32
    %v235 = vpop.permute.xlu0 %234
    %237 = vst.msk [vmem:[#allocation7 + $0x6] sm:$0x1] %vm42, %v235
    %s238 = sadd.s32 %s28, 26
    %s239 = sld [smem:[#allocation3 + %s238]]
    %s240 = scalar_lea.vmem [#allocation4], %s239
    %v241 = vld [vmem:[%s240] sm:$0x1]
    %243 = vrot.lane.b32.xlu0 %v241, 64
    %v244 = vpop.permute.xlu0 %243
    %246 = vst.msk [vmem:[#allocation7 + $0x6] sm:$0x1] %vm52, %v244
    %s247 = sadd.s32 %s28, 27
    %s248 = sld [smem:[#allocation3 + %s247]]
    %s249 = scalar_lea.vmem [#allocation4], %s248
    %v250 = vld [vmem:[%s249] sm:$0x1]
    %252 = vrot.lane.b32.xlu0 %v250, 96
    %v253 = vpop.permute.xlu0 %252
    %255 = vst.msk [vmem:[#allocation7 + $0x6] sm:$0x1] %vm62, %v253
    %s256 = sadd.s32 %s28, 28
    %s257 = sld [smem:[#allocation3 + %s256]]
    %s258 = scalar_lea.vmem [#allocation4], %s257
    %v259 = vld [vmem:[%s258] sm:$0x1]
    %260 = vst.msk [vmem:[#allocation7 + $0x7] sm:$0x1] %vm32, %v259
    %s261 = sadd.s32 %s28, 29
    %s262 = sld [smem:[#allocation3 + %s261]]
    %s263 = scalar_lea.vmem [#allocation4], %s262
    %v264 = vld [vmem:[%s263] sm:$0x1]
    %266 = vrot.lane.b32.xlu0 %v264, 32
    %v267 = vpop.permute.xlu0 %266
    %269 = vst.msk [vmem:[#allocation7 + $0x7] sm:$0x1] %vm42, %v267
    %s270 = sadd.s32 %s28, 30
    %s271 = sld [smem:[#allocation3 + %s270]]
    %s272 = scalar_lea.vmem [#allocation4], %s271
    %v273 = vld [vmem:[%s272] sm:$0x1]
    %275 = vrot.lane.b32.xlu0 %v273, 64
    %v276 = vpop.permute.xlu0 %275
    %278 = vst.msk [vmem:[#allocation7 + $0x7] sm:$0x1] %vm52, %v276
    %s279 = sadd.s32 %s28, 31
    %s280 = sld [smem:[#allocation3 + %s279]]
    %s281 = scalar_lea.vmem [#allocation4], %s280
    %v282 = vld [vmem:[%s281] sm:$0x1]
    %284 = vrot.lane.b32.xlu0 %v282, 96
    %v285 = vpop.permute.xlu0 %284
    %287 = vst.msk [vmem:[#allocation7 + $0x7] sm:$0x1] %vm62, %v285
    // Predicated region
    $region10: #{tpu_custom_call.1} parent=1 // pred_check
      _
    $region11: #{tpu_custom_call.1} parent=1 // pred_check_branch
      %289 = sbr.rel (0) target = $region13
    $region12: #{tpu_custom_call.1} parent=1 // pred_region
      %s291 = ssub.s32 128, 128
      %292 = vsyncadd [#allocation6], %s291
      %s294 = sshll.u32 [#allocation7], 4
      %s295 = int_to_ptr.vmem [resolvable:$true] %s294
      %297 = dma.vmem_to_hbm [thread:$0]  %s295, 128, %s2, [#allocation6]
    $region13: #{tpu_custom_call.1} parent=1 // pred_fallthru
      _
    // Predicated region
    $region14: #{tpu_custom_call.1} parent=1 // pred_check
      _
    $region15: #{tpu_custom_call.1} parent=1 // pred_check_branch
      %299 = sbr.rel (0) target = $region17
    $region16: #{tpu_custom_call.1} parent=1 // pred_region
      %300 = dma.done [#allocation6], 128
    $region17: #{tpu_custom_call.1} parent=1 // pred_fallthru
      _
    %301 = vsyncpa [#allocation5], 1
    %302 = vsyncpa [#allocation6], 1

</llo_original>
